<compile_context>
chip_gen: v5e
topology: v5e:2x2
jax: 0.10.0
libtpu: 0.0.40
codegen_flags: <defaults>
</compile_context>

<pallas_src>
import functools

import numpy as np
import jax
import jax.numpy as jnp
from jax import lax
from jax.experimental import pallas as pl
from jax.experimental.pallas import tpu as pltpu

_VMEM_LIMIT = 48 * 1024 * 1024


# --------------------------------------------------------------------------- #
# Pallas kernels
# --------------------------------------------------------------------------- #
def _dense_kernel(x_ref, w_ref, b_ref, o_ref, *, leaky):
    # x: (TR, K) bf16, w: (K, C) bf16 (resident), b: (1, C) f32
    acc = jnp.dot(x_ref[...], w_ref[...], preferred_element_type=jnp.float32)
    y = acc + b_ref[...]
    if leaky:
        y = jnp.maximum(y, 0.2 * y)          # LeakyReLU(0.2) in f32
    o_ref[...] = y.astype(o_ref.dtype)


def _max4_kernel(a_ref, b_ref, c_ref, d_ref, o_ref):
    o_ref[...] = jnp.maximum(jnp.maximum(a_ref[...], b_ref[...]),
                             jnp.maximum(c_ref[...], d_ref[...]))


def _pick_row_tile(rows, k):
    """Largest row tile (divisor of rows) that keeps the activation tile a few MiB."""
    if k <= 512:
        target = 1024
    elif k <= 2304:
        target = 512
    else:
        target = 256
    if rows <= target:
        return rows
    t = target
    while t >= 16 and rows % t:
        t //= 2
    return t if (t >= 16 and rows % t == 0) else rows


@functools.lru_cache(maxsize=None)
def _dense_call(rows, k, c, leaky, out_dtype):
    tr = _pick_row_tile(rows, k)
    fn = pl.pallas_call(
        functools.partial(_dense_kernel, leaky=leaky),
        grid=(rows // tr,),
        in_specs=[
            pl.BlockSpec((tr, k), lambda i: (i, 0)),   # activation row tiles
            pl.BlockSpec((k, c), lambda i: (0, 0)),    # weights resident in VMEM
            pl.BlockSpec((1, c), lambda i: (0, 0)),    # folded BN/bias resident
        ],
        out_specs=pl.BlockSpec((tr, c), lambda i: (i, 0)),
        out_shape=jax.ShapeDtypeStruct((rows, c), out_dtype),
        compiler_params=pltpu.CompilerParams(
            dimension_semantics=("parallel",),
            vmem_limit_bytes=_VMEM_LIMIT,
        ),
    )
    return jax.jit(fn)


def pallas_dense(x2d, w, b, *, leaky, out_dtype):
    rows, k = x2d.shape
    c = w.shape[1]
    fn = _dense_call(rows, k, c, leaky, out_dtype)
    return fn(x2d, w, b.reshape(1, c))


@functools.lru_cache(maxsize=None)
def _maxpool_call(rows, c):
    tr = _pick_row_tile(rows, 0)
    spec = pl.BlockSpec((tr, c), lambda i: (i, 0))
    fn = pl.pallas_call(
        _max4_kernel,
        grid=(rows // tr,),
        in_specs=[spec, spec, spec, spec],
        out_specs=spec,
        out_shape=jax.ShapeDtypeStruct((rows, c), jnp.bfloat16),
        compiler_params=pltpu.CompilerParams(
            dimension_semantics=("parallel",),
            vmem_limit_bytes=_VMEM_LIMIT,
        ),
    )
    return jax.jit(fn)


def pallas_maxpool2x2(x):
    b, h, w, c = x.shape
    ho, wo = h // 2, w // 2
    rows = b * ho * wo
    views = [x[:, dy::2, dx::2, :].reshape(rows, c)
             for dy in (0, 1) for dx in (0, 1)]
    out = _maxpool_call(rows, c)(*views)
    return out.reshape(b, ho, wo, c)


# --------------------------------------------------------------------------- #
# Conv block = im2col (wrapper) + fused Pallas matmul/bias/LeakyReLU kernel
# --------------------------------------------------------------------------- #
def _im2col(x, k, stride, pad):
    b, h, w, c = x.shape
    ho = (h + 2 * pad - k) // stride + 1
    wo = (w + 2 * pad - k) // stride + 1
    xp = jnp.pad(x, ((0, 0), (pad, pad), (pad, pad), (0, 0)))
    cols = [xp[:, dy:dy + stride * ho:stride, dx:dx + stride * wo:stride, :]
            for dy in range(k) for dx in range(k)]
    patches = jnp.concatenate(cols, axis=-1)            # (B, Ho, Wo, K*K*C)
    return patches.reshape(b * ho * wo, k * k * c), ho, wo


def pallas_conv_block(x, layer):
    k, stride, pad = layer["k"], layer["stride"], layer["pad"]
    cout = layer["w"].shape[-1]
    patches, ho, wo = _im2col(x, k, stride, pad)
    w2d = layer["w"].reshape(-1, cout)                  # (K*K*Cin, Cout) bf16
    y = pallas_dense(patches, w2d, layer["b"], leaky=True, out_dtype=jnp.bfloat16)
    return y.reshape(x.shape[0], ho, wo, cout)


# --------------------------------------------------------------------------- #
# Full CNN_Encoder forward (Pallas path)
# --------------------------------------------------------------------------- #
def cnn_encoder_pallas(x_nchw, folded):
    h = jnp.transpose(x_nchw, (0, 2, 3, 1)).astype(jnp.bfloat16)   # NCHW -> NHWC
    for layer in folded["conv_layers"] + folded["mlp_conv"]:
        if isinstance(layer, str):            # "pool"
            h = pallas_maxpool2x2(h)
        else:
            h = pallas_conv_block(h, layer)
    b = h.shape[0]
    h = h.reshape(b, -1)                      # (B, 256*4*4), channel-last flatten
    for fc in folded["fc_blocks"]:
        # TODO(synk): Dropout(0.3) is identity in eval mode; training-mode masking
        # (pltpu.prng_random_bits) is not implemented here.
        h = pallas_dense(h, fc["w"], fc["b"], leaky=True, out_dtype=jnp.bfloat16)
    head = folded["head"]                     # fused [256, 2*latent] projection
    mv = pallas_dense(h, head["w"], head["b"], leaky=False, out_dtype=jnp.float32)
    latent = head["w"].shape[1] // 2
    return mv[:, :latent], mv[:, latent:]


# --------------------------------------------------------------------------- #
# Pure-JAX reference (lax.conv / reduce_window / jnp.dot) for validation
# --------------------------------------------------------------------------- #
def cnn_encoder_reference(x_nchw, folded):
    h = jnp.transpose(x_nchw, (0, 2, 3, 1)).astype(jnp.bfloat16)
    for layer in folded["conv_layers"] + folded["mlp_conv"]:
        if isinstance(layer, str):
            h = lax.reduce_window(h, jnp.array(-jnp.inf, h.dtype), lax.max,
                                  (1, 2, 2, 1), (1, 2, 2, 1), "VALID")
        else:
            s, p = layer["stride"], layer["pad"]
            y = lax.conv_general_dilated(
                h, layer["w"], (s, s), [(p, p), (p, p)],
                dimension_numbers=("NHWC", "HWIO", "NHWC"),
                preferred_element_type=jnp.float32)
            y = y + layer["b"]
            h = jnp.maximum(y, 0.2 * y).astype(jnp.bfloat16)
    b = h.shape[0]
    h = h.reshape(b, -1)
    for fc in folded["fc_blocks"]:
        y = jnp.dot(h, fc["w"], preferred_element_type=jnp.float32) + fc["b"]
        h = jnp.maximum(y, 0.2 * y).astype(jnp.bfloat16)
    head = folded["head"]
    mv = jnp.dot(h, head["w"], preferred_element_type=jnp.float32) + head["b"]
    latent = head["w"].shape[1] // 2
    return mv[:, :latent], mv[:, latent:]


# --------------------------------------------------------------------------- #
# Parameters (eval-mode BatchNorm folded into bf16 weights / f32 biases)
# --------------------------------------------------------------------------- #
_CONV_LAYERS_SPEC = [
    (1, 32, 5, 1, 2), (32, 32, 3, 1, 1), (32, 32, 3, 1, 1), "pool",
    (32, 64, 5, 1, 2), (64, 64, 3, 1, 1), (64, 64, 3, 1, 1), "pool",
    (64, 128, 5, 1, 2), (128, 128, 3, 1, 1), (128, 128, 3, 1, 1), "pool",
    (128, 256, 5, 1, 2), (256, 256, 3, 1, 1), (256, 256, 3, 1, 1), "pool",
    (256, 256, 5, 1, 2), (256, 256, 3, 1, 1), (256, 256, 3, 1, 1),
]

# MLP_Encoder(input_channels=256, hidden_dim1=384, hidden_dim2=256, J=2):
# conv_to_latent = conv(256->256, s1) + 3 x [conv(s1), conv(s2, downsample)]
_MLP_CONV_SPEC = [(256, 256, 3, 1, 1)]
for _ in range(3):
    _MLP_CONV_SPEC += [(256, 256, 3, 1, 1), (256, 256, 3, 2, 1)]


def _fold_bn(w, b, gamma, beta, mean, var, eps=1e-5):
    scale = gamma * lax.rsqrt(var + eps)
    w_f = (w * scale).astype(jnp.bfloat16)
    b_f = ((b - mean) * scale + beta).astype(jnp.float32)
    return w_f, b_f


def init_folded_params(key, latent_dim):
    keys = iter(jax.random.split(key, 256))

    def bn_stats(cout):
        gamma = 1.0 + 0.1 * jax.random.normal(next(keys), (cout,), jnp.float32)
        beta = 0.1 * jax.random.normal(next(keys), (cout,), jnp.float32)
        mean = 0.1 * jax.random.normal(next(keys), (cout,), jnp.float32)
        var = 1.0 + 0.1 * jax.random.uniform(next(keys), (cout,), jnp.float32)
        return gamma, beta, mean, var

    def conv_block(cin, cout, k, stride, pad):
        std = np.sqrt(2.0 / (k * k * cin))
        w = std * jax.random.normal(next(keys), (k, k, cin, cout), jnp.float32)
        b = 0.01 * jax.random.normal(next(keys), (cout,), jnp.float32)
        w_f, b_f = _fold_bn(w, b, *bn_stats(cout))
        return dict(w=w_f, b=b_f, k=k, stride=stride, pad=pad)

    def fc_block(din, dout):
        std = np.sqrt(2.0 / din)
        w = std * jax.random.normal(next(keys), (din, dout), jnp.float32)
        b = 0.01 * jax.random.normal(next(keys), (dout,), jnp.float32)
        w_f, b_f = _fold_bn(w, b, *bn_stats(dout))
        return dict(w=w_f, b=b_f)

    conv_layers = [s if isinstance(s, str) else conv_block(*s)
                   for s in _CONV_LAYERS_SPEC]
    mlp_conv = [conv_block(*s) for s in _MLP_CONV_SPEC]

    hidden_dim1, hidden_dim2 = 384, 256
    fc_blocks = [fc_block(hidden_dim2 * 4 * 4, hidden_dim1),   # FC_input
                 fc_block(hidden_dim1, hidden_dim2)]           # FC_hidden

    # FC_mean / FC_var fused into one lane-dense [hidden_dim2, 2*latent] matmul.
    std = 1.0 / np.sqrt(hidden_dim2)
    w_mean = std * jax.random.normal(next(keys), (hidden_dim2, latent_dim), jnp.float32)
    b_mean = 0.01 * jax.random.normal(next(keys), (latent_dim,), jnp.float32)
    w_var = std * jax.random.normal(next(keys), (hidden_dim2, latent_dim), jnp.float32)
    b_var = 0.01 * jax.random.normal(next(keys), (latent_dim,), jnp.float32)
    head = dict(w=jnp.concatenate([w_mean, w_var], axis=1).astype(jnp.bfloat16),
                b=jnp.concatenate([b_mean, b_var]).astype(jnp.float32))

    return dict(conv_layers=conv_layers, mlp_conv=mlp_conv,
                fc_blocks=fc_blocks, head=head)


# --------------------------------------------------------------------------- #
if __name__ == "__main__":
    latent_dim = 32
    batch = 2
    # The FC head hard-codes hidden_dim2 * 4 * 4 input features; with the total
    # /128 downsampling (4 MaxPools + 3 stride-2 convs) this implies a 512x512
    # single-channel input, which is what the forward pass requires.
    spatial = 512

    key = jax.random.PRNGKey(0)
    k_x, k_p = jax.random.split(key)
    x = jax.random.normal(k_x, (batch, 1, spatial, spatial), jnp.float32)
    folded = init_folded_params(k_p, latent_dim)

    mean, logvar = cnn_encoder_pallas(x, folded)
    jax.block_until_ready((mean, logvar))

    mean_ref, logvar_ref = cnn_encoder_reference(x, folded)
    jax.block_until_ready((mean_ref, logvar_ref))

    assert mean.shape == (batch, latent_dim) and logvar.shape == (batch, latent_dim)
    np.testing.assert_allclose(np.asarray(mean), np.asarray(mean_ref),
                               atol=5e-2, rtol=5e-2)
    np.testing.assert_allclose(np.asarray(logvar), np.asarray(logvar_ref),
                               atol=5e-2, rtol=5e-2)

    print("KERNEL_OK")
</pallas_src>

<mosaic_0001>
module attributes {stable_mosaic.version = 11 : i64} {
  func.func @_dense_kernel(%arg0: i32, %arg1: memref<1024x25xbf16, #tpu.memory_space<vmem>>, %arg2: memref<25x32xbf16, #tpu.memory_space<vmem>>, %arg3: memref<1x32xf32, #tpu.memory_space<vmem>>, %arg4: memref<1024x32xbf16, #tpu.memory_space<vmem>>) attributes {dimension_semantics = [#tpu.dimension_semantics<parallel>], iteration_bounds = array<i64: 512>, scalar_prefetch = 0 : i64, scratch_operands = 0 : i64, tpu.core_type = #tpu.core_type<tc>, window_params = [{transform_indices = @transform_0, window_bounds = array<i64: 1024, 25>}, {pipeline_mode = #tpu.pipeline_mode<synchronous>, transform_indices = @transform_1, window_bounds = array<i64: 25, 32>}, {pipeline_mode = #tpu.pipeline_mode<synchronous>, transform_indices = @transform_2, window_bounds = array<i64: 1, 32>}, {transform_indices = @transform_3, window_bounds = array<i64: 1024, 32>}]} {
    %c0 = arith.constant 0 : index
    %c0_0 = arith.constant 0 : index
    %0 = vector.load %arg1[%c0, %c0_0] : memref<1024x25xbf16, #tpu.memory_space<vmem>>, vector<1024x25xbf16>
    %c0_1 = arith.constant 0 : index
    %c0_2 = arith.constant 0 : index
    %1 = vector.load %arg2[%c0_1, %c0_2] : memref<25x32xbf16, #tpu.memory_space<vmem>>, vector<25x32xbf16>
    %cst = arith.constant dense<0.000000e+00> : vector<1024x32xf32>
    %2 = tpu.matmul %0, %1, %cst {dimension_numbers = #tpu.dot_dimension_numbers<[1], [0], [0], [1], [0, 0, 1, 1], [], []>} : vector<1024x25xbf16>, vector<25x32xbf16>, vector<1024x32xf32> -> vector<1024x32xf32>
    %c0_3 = arith.constant 0 : index
    %c0_4 = arith.constant 0 : index
    %3 = vector.load %arg3[%c0_3, %c0_4] : memref<1x32xf32, #tpu.memory_space<vmem>>, vector<1x32xf32>
    %4 = vector.broadcast %3 : vector<1x32xf32> to vector<1024x32xf32>
    %5 = arith.addf %2, %4 : vector<1024x32xf32>
    %cst_5 = arith.constant 2.000000e-01 : f32
    %6 = vector.broadcast %cst_5 : f32 to vector<1024x32xf32>
    %7 = arith.mulf %6, %5 : vector<1024x32xf32>
    %8 = arith.maximumf %5, %7 : vector<1024x32xf32>
    %9 = arith.truncf %8 : vector<1024x32xf32> to vector<1024x32xbf16>
    %c0_6 = arith.constant 0 : index
    %c0_7 = arith.constant 0 : index
    %10 = vector.load %arg4[%c0_6, %c0_7] : memref<1024x32xbf16, #tpu.memory_space<vmem>>, vector<1024x32xbf16>
    tpu.vector_store %arg4[%c0_6, %c0_7], %9 {strides = array<i32>} : memref<1024x32xbf16, #tpu.memory_space<vmem>>, vector<1024x32xbf16>,
    return
  }
  func.func @transform_0(%arg0: i32) -> (i32, i32) {
    %c0_i32 = arith.constant 0 : i32
    %c0_i32_0 = arith.constant 0 : i32
    return %arg0, %c0_i32 : i32, i32
  }
  func.func @transform_1(%arg0: i32) -> (i32, i32) {
    %c0_i32 = arith.constant 0 : i32
    %c0_i32_0 = arith.constant 0 : i32
    %c0_i32_1 = arith.constant 0 : i32
    return %c0_i32, %c0_i32_0 : i32, i32
  }
  func.func @transform_2(%arg0: i32) -> (i32, i32) {
    %c0_i32 = arith.constant 0 : i32
    %c0_i32_0 = arith.constant 0 : i32
    %c0_i32_1 = arith.constant 0 : i32
    return %c0_i32, %c0_i32_0 : i32, i32
  }
  func.func @transform_3(%arg0: i32) -> (i32, i32) {
    %c0_i32 = arith.constant 0 : i32
    %c0_i32_0 = arith.constant 0 : i32
    return %arg0, %c0_i32 : i32, i32
  }
}

</mosaic_0001>

<llo_original>
// kernel: tpu_custom_call.1
$region0: #{tpu_custom_call.1}
  #allocation0 [shape = 'u32[]', space=smem, size = 0x4, offset = 0x4, fixed_abs, tag = 'smem constant byte address 0x4 - core index']
  #allocation1 [shape = 'u32[72,128]{1,0:T(1,128)}', space=vmem, size = 0x9000, scoped, tag = 'internal scratch']
  %s0 = inlined_call_operand.hbm [shape: bf16[524288,25], index: 0, kind: input, shape index: {}]
  %s1 = inlined_call_operand.vmem [shape: bf16[25,32], index: 1, kind: input, shape index: {}]
  %s2 = inlined_call_operand.vmem [shape: f32[1,32], index: 2, kind: input, shape index: {}]
  %s3 = inlined_call_operand.hbm [shape: bf16[524288,32], index: 3, kind: output, shape index: {}]
  %s4 = sld [smem:[#allocation0]]
  $region49: #{tpu_custom_call.1} parent=0
    _
  %s6 = ssub.s32 1, %s4
  %s7 = scalar_select 0, %s6, %s4
  $region1: #{tpu_custom_call.1} parent=0
    #allocation2 [shape = 'u8[524288]{0}', space=vmem, size = 0x80000, scoped, tag = 'input window, operand 0']
    #allocation3 [shape = 's32[2]{0}', space=sflag, size = 0x8, scoped, tag = 'scoped memory for tpu_custom_call.1']
    #allocation4 [shape = 's32[2]{0}', space=sflag, size = 0x8, scoped, tag = 'scoped memory for tpu_custom_call.1']
    #allocation5 [shape = 'u8[524288]{0}', space=vmem, size = 0x80000, scoped, tag = 'output window, operand 0']
    %8 = vsyncpa [#allocation3], 0
    %s9 = scalar_lea.sflag [#allocation3], 1
    %10 = vsyncpa %s9, 0
    %11 = vsyncpa [#allocation4], 0
    %s12 = scalar_lea.sflag [#allocation4], 1
    %13 = vsyncpa %s12, 0
    loop: start=0, step=1, limit=514
    $region2: #{tpu_custom_call.1} parent=1 // loop_pre_header
      _
    $region3: #{tpu_custom_call.1} parent=1 // loop_header
      %s15 = sphi 0, %s19
      %p16 = scmp.ge.s32.totalorder %s15, 514
      %s25 = sphi 0, %s27
      %s28 = sphi 0, %s25
      %s29 = sphi 0, %s28
      %s45 = sphi 0, %s29
      %s49 = sphi 0, %s49
      %s51 = sphi 0, %s49
      %s52 = sphi 0, %s51
      %s66 = sphi 0, %s52
      %s70 = sphi 0, %s70
      %s72 = sphi 0, %s70
      %s73 = sphi 0, %s72
      %s87 = sphi 0, %s73
      %s93 = sphi 0, %s95
      %s96 = sphi 0, %s93
      %s97 = sphi 0, %s96
      %s113 = sphi 0, %s97
    $region4: #{tpu_custom_call.1} parent=1 // loop_header_branch
      %18 = sbr.rel (%p16) target = $region8
    $region5: #{tpu_custom_call.1} parent=1 // loop_body
      %s20 = ssub.s32 %s15, 1
      %s21 = ssub.s32 %s15, 2
      %s22 = sadd.s32 %s15, 1
      %s23 = ssub.s32 %s15, %s22
      %p24 = scmp.eq.s32.totalorder %s23, 0
      %s26 = sadd.s32 %s25, 1
      %s27 = scalar_select %p24, %s25, %s26
      %p30 = pneg %p24
      %p31 = scmp.eq.s32.totalorder %s15, 511
      %p32 = por %p30, %p31
      %p33 = scmp.ne.s32.totalorder %s25, %s28
      %p34 = scmp.eq.s32.totalorder %s15, 0
      %p35 = por %p33, %p34
      %p36 = scmp.ne.s32.totalorder %s25, %s28
      %p37 = scmp.eq.s32.totalorder %s20, 511
      %p38 = por %p36, %p37
      %p39 = scmp.ne.s32.totalorder %s28, %s29
      %p40 = scmp.eq.s32.totalorder %s20, 0
      %p41 = por %p39, %p40
      %p42 = scmp.ne.s32.totalorder %s28, %s29
      %p43 = scmp.eq.s32.totalorder %s21, 511
      %p44 = por %p42, %p43
      %p46 = scmp.ne.s32.totalorder %s29, %s45
      %p47 = scmp.eq.s32.totalorder %s21, 0
      %p48 = por %p46, %p47
      %s50 = sadd.s32 %s49, 1
      %p53 = scmp.eq.s32.totalorder %s15, 511
      %p54 = scmp.ne.s32.totalorder %s49, %s51
      %p55 = scmp.eq.s32.totalorder %s15, 0
      %p56 = por %p54, %p55
      %p57 = scmp.ne.s32.totalorder %s49, %s51
      %p58 = scmp.eq.s32.totalorder %s20, 511
      %p59 = por %p57, %p58
      %p60 = scmp.ne.s32.totalorder %s51, %s52
      %p61 = scmp.eq.s32.totalorder %s20, 0
      %p62 = por %p60, %p61
      %p63 = scmp.ne.s32.totalorder %s51, %s52
      %p64 = scmp.eq.s32.totalorder %s21, 511
      %p65 = por %p63, %p64
      %p67 = scmp.ne.s32.totalorder %s52, %s66
      %p68 = scmp.eq.s32.totalorder %s21, 0
      %p69 = por %p67, %p68
      %s71 = sadd.s32 %s70, 1
      %p74 = scmp.eq.s32.totalorder %s15, 511
      %p75 = scmp.ne.s32.totalorder %s70, %s72
      %p76 = scmp.eq.s32.totalorder %s15, 0
      %p77 = por %p75, %p76
      %p78 = scmp.ne.s32.totalorder %s70, %s72
      %p79 = scmp.eq.s32.totalorder %s20, 511
      %p80 = por %p78, %p79
      %p81 = scmp.ne.s32.totalorder %s72, %s73
      %p82 = scmp.eq.s32.totalorder %s20, 0
      %p83 = por %p81, %p82
      %p84 = scmp.ne.s32.totalorder %s72, %s73
      %p85 = scmp.eq.s32.totalorder %s21, 511
      %p86 = por %p84, %p85
      %p88 = scmp.ne.s32.totalorder %s73, %s87
      %p89 = scmp.eq.s32.totalorder %s21, 0
      %p90 = por %p88, %p89
      %s91 = ssub.s32 %s15, %s22
      %p92 = scmp.eq.s32.totalorder %s91, 0
      %s94 = sadd.s32 %s93, 1
      %s95 = scalar_select %p92, %s93, %s94
      %p98 = pneg %p92
      %p99 = scmp.eq.s32.totalorder %s15, 511
      %p100 = por %p98, %p99
      %p101 = scmp.ne.s32.totalorder %s93, %s96
      %p102 = scmp.eq.s32.totalorder %s15, 0
      %p103 = por %p101, %p102
      %p104 = scmp.ne.s32.totalorder %s93, %s96
      %p105 = scmp.eq.s32.totalorder %s20, 511
      %p106 = por %p104, %p105
      %p107 = scmp.ne.s32.totalorder %s96, %s97
      %p108 = scmp.eq.s32.totalorder %s20, 0
      %p109 = por %p107, %p108
      %p110 = scmp.ne.s32.totalorder %s96, %s97
      %p111 = scmp.eq.s32.totalorder %s21, 511
      %p112 = por %p110, %p111
      %p114 = scmp.ne.s32.totalorder %s97, %s113
      %p115 = scmp.eq.s32.totalorder %s21, 0
      %p116 = por %p114, %p115
      %p117 = scmp.le.s32.totalorder 1, %s15
      %p118 = scmp.lt.s32.totalorder %s15, 513
      %p119 = pnand %p117, %p118
      %p120 = pneg %p119
      // Predicated region
      $region9: #{tpu_custom_call.1} parent=5 // pred_check
        _
      $region10: #{tpu_custom_call.1} parent=5 // pred_check_branch
        %122 = sbr.rel (%p119) target = $region12
      $region11: #{tpu_custom_call.1} parent=5 // pred_region
        %s123 = ssub.s32 %s15, 1
        // Predicated region
        $region13: #{tpu_custom_call.1} parent=11 // pred_check
          %p124 = pneg %p62
        $region14: #{tpu_custom_call.1} parent=11 // pred_check_branch
          %126 = sbr.rel (%p124) target = $region16
        $region15: #{tpu_custom_call.1} parent=11 // pred_region
          _
        $region16: #{tpu_custom_call.1} parent=11 // pred_fallthru
          _
        // Predicated region
        $region17: #{tpu_custom_call.1} parent=11 // pred_check
          %p127 = pneg %p83
        $region18: #{tpu_custom_call.1} parent=11 // pred_check_branch
          %129 = sbr.rel (%p127) target = $region20
        $region19: #{tpu_custom_call.1} parent=11 // pred_region
          _
        $region20: #{tpu_custom_call.1} parent=11 // pred_fallthru
          _
      $region12: #{tpu_custom_call.1} parent=5 // pred_fallthru
        _
      %p130 = scmp.lt.s32.totalorder %s15, 512
      // Predicated region
      $region21: #{tpu_custom_call.1} parent=5 // pred_check
        %p131 = pneg %p130
      $region22: #{tpu_custom_call.1} parent=5 // pred_check_branch
        %133 = sbr.rel (%p131) target = $region24
      $region23: #{tpu_custom_call.1} parent=5 // pred_region
        // Predicated region
        $region25: #{tpu_custom_call.1} parent=23 // pred_check
          %p134 = pneg %p35
        $region26: #{tpu_custom_call.1} parent=23 // pred_check_branch
          %136 = sbr.rel (%p134) target = $region28
        $region27: #{tpu_custom_call.1} parent=23 // pred_region
          %s137 = sand.u32 %s25, 1
          %s138 = scalar_lea.sflag [#allocation3], %s137
          %s139 = sand.u32 %s25, 1
          %s140 = smul.addr %s139, 512
          %s141 = scalar_lea.vmem [#allocation2], %s140
          %s142 = smul.u32 128, %s15
          %144 = vsyncadd %s138, 0
          %s145 = smul.addr %s142, 4
          %s146 = scalar_lea.hbm %s0, %s145
          %s147 = sshll.u32 %s146, 4
          %s148 = int_to_ptr.hbm [resolvable:$true] %s147
          %s149 = sshll.u32 %s141, 4
          %s150 = int_to_ptr.vmem [resolvable:$true] %s149
          %155 = dma.hbm_to_vmem [thread:$0]  %s148, 8192, %s150, %s138, 64, 64, 4
        $region28: #{tpu_custom_call.1} parent=23 // pred_fallthru
          _
      $region24: #{tpu_custom_call.1} parent=5 // pred_fallthru
        _
      %p156 = scmp.le.s32.totalorder 1, %s15
      %p157 = scmp.lt.s32.totalorder %s15, 513
      %p158 = pnand %p156, %p157
      %p159 = pneg %p158
      // Predicated region
      $region29: #{tpu_custom_call.1} parent=5 // pred_check
        _
      $region30: #{tpu_custom_call.1} parent=5 // pred_check_branch
        %161 = sbr.rel (%p158) target = $region32
      $region31: #{tpu_custom_call.1} parent=5 // pred_region
        %s162 = ssub.s32 %s15, 1
        %s163 = sand.u32 %s28, 1
        %s164 = scalar_lea.sflag [#allocation3], %s163
        %s165 = sand.u32 %s28, 1
        %s166 = smul.addr %s165, 512
        %s167 = scalar_lea.vmem [#allocation2], %s166
        // Predicated region
        $region33: #{tpu_custom_call.1} parent=31 // pred_check
          %p168 = pneg %p41
        $region34: #{tpu_custom_call.1} parent=31 // pred_check_branch
          %170 = sbr.rel (%p168) target = $region36
        $region35: #{tpu_custom_call.1} parent=31 // pred_region
          %172 = dma.done %s164, 8192
        $region36: #{tpu_custom_call.1} parent=31 // pred_fallthru
          _
        %s173 = sand.u32 %s28, 1
        %s174 = scalar_lea.sflag [#allocation3], %s173
        %s175 = sand.u32 %s28, 1
        %s176 = smul.addr %s175, 512
        %s177 = scalar_lea.vmem [#allocation2], %s176
        %p178 = pneg %p41
        %p179 = pneg %p38
        %p180 = pneg %p62
        %p181 = pneg %p59
        %p182 = pneg %p83
        %p183 = pneg %p80
        %p184 = pneg %p109
        %p185 = pneg %p106
        %s186 = sand.u32 %s96, 1
        %s187 = scalar_lea.sflag [#allocation4], %s186
        %s188 = sand.u32 %s96, 1
        %s189 = smul.addr %s188, 512
        %s190 = scalar_lea.vmem [#allocation5], %s189
        %s191 = smul.u32 128, %s20
        %s192 = smul.u32 128, %s20
        %v194 = vld [vmem:[%s167] sm:$0xf]
        %v195 = vld [vmem:[%s167 + $0x4] sm:$0xf]
        %v196 = vld [vmem:[%s167 + $0x8] sm:$0xf]
        %v197 = vld [vmem:[%s167 + $0xc] sm:$0xf]
        %v198 = vld [vmem:[%s167 + $0x10] sm:$0xf]
        %v199 = vld [vmem:[%s167 + $0x14] sm:$0xf]
        %v200 = vld [vmem:[%s167 + $0x18] sm:$0xf]
        %v201 = vld [vmem:[%s167 + $0x1c] sm:$0xf]
        %v202 = vld [vmem:[%s167 + $0x20] sm:$0xf]
        %v203 = vld [vmem:[%s167 + $0x24] sm:$0xf]
        %v204 = vld [vmem:[%s167 + $0x28] sm:$0xf]
        %v205 = vld [vmem:[%s167 + $0x2c] sm:$0xf]
        %v206 = vld [vmem:[%s167 + $0x30] sm:$0xf]
        %v207 = vld [vmem:[%s167 + $0x34] sm:$0xf]
        %v208 = vld [vmem:[%s167 + $0x38] sm:$0xf]
        %v209 = vld [vmem:[%s167 + $0x3c] sm:$0xf]
        %v210 = vld [vmem:[%s167 + $0x40] sm:$0xf]
        %v211 = vld [vmem:[%s167 + $0x44] sm:$0xf]
        %v212 = vld [vmem:[%s167 + $0x48] sm:$0xf]
        %v213 = vld [vmem:[%s167 + $0x4c] sm:$0xf]
        %v214 = vld [vmem:[%s167 + $0x50] sm:$0xf]
        %v215 = vld [vmem:[%s167 + $0x54] sm:$0xf]
        %v216 = vld [vmem:[%s167 + $0x58] sm:$0xf]
        %v217 = vld [vmem:[%s167 + $0x5c] sm:$0xf]
        %v218 = vld [vmem:[%s167 + $0x60] sm:$0xf]
        %v219 = vld [vmem:[%s167 + $0x64] sm:$0xf]
        %v220 = vld [vmem:[%s167 + $0x68] sm:$0xf]
        %v221 = vld [vmem:[%s167 + $0x6c] sm:$0xf]
        %v222 = vld [vmem:[%s167 + $0x70] sm:$0xf]
        %v223 = vld [vmem:[%s167 + $0x74] sm:$0xf]
        %v224 = vld [vmem:[%s167 + $0x78] sm:$0xf]
        %v225 = vld [vmem:[%s167 + $0x7c] sm:$0xf]
        %v226 = vld [vmem:[%s167 + $0x80] sm:$0xf]
        %v227 = vld [vmem:[%s167 + $0x84] sm:$0xf]
        %v228 = vld [vmem:[%s167 + $0x88] sm:$0xf]
        %v229 = vld [vmem:[%s167 + $0x8c] sm:$0xf]
        %v230 = vld [vmem:[%s167 + $0x90] sm:$0xf]
        %v231 = vld [vmem:[%s167 + $0x94] sm:$0xf]
        %v232 = vld [vmem:[%s167 + $0x98] sm:$0xf]
        %v233 = vld [vmem:[%s167 + $0x9c] sm:$0xf]
        %v234 = vld [vmem:[%s167 + $0xa0] sm:$0xf]
        %v235 = vld [vmem:[%s167 + $0xa4] sm:$0xf]
        %v236 = vld [vmem:[%s167 + $0xa8] sm:$0xf]
        %v237 = vld [vmem:[%s167 + $0xac] sm:$0xf]
        %v238 = vld [vmem:[%s167 + $0xb0] sm:$0xf]
        %v239 = vld [vmem:[%s167 + $0xb4] sm:$0xf]
        %v240 = vld [vmem:[%s167 + $0xb8] sm:$0xf]
        %v241 = vld [vmem:[%s167 + $0xbc] sm:$0xf]
        %v242 = vld [vmem:[%s167 + $0xc0] sm:$0xf]
        %v243 = vld [vmem:[%s167 + $0xc4] sm:$0xf]
        %v244 = vld [vmem:[%s167 + $0xc8] sm:$0xf]
        %v245 = vld [vmem:[%s167 + $0xcc] sm:$0xf]
        %v246 = vld [vmem:[%s167 + $0xd0] sm:$0xf]
        %v247 = vld [vmem:[%s167 + $0xd4] sm:$0xf]
        %v248 = vld [vmem:[%s167 + $0xd8] sm:$0xf]
        %v249 = vld [vmem:[%s167 + $0xdc] sm:$0xf]
        %v250 = vld [vmem:[%s167 + $0xe0] sm:$0xf]
        %v251 = vld [vmem:[%s167 + $0xe4] sm:$0xf]
        %v252 = vld [vmem:[%s167 + $0xe8] sm:$0xf]
        %v253 = vld [vmem:[%s167 + $0xec] sm:$0xf]
        %v254 = vld [vmem:[%s167 + $0xf0] sm:$0xf]
        %v255 = vld [vmem:[%s167 + $0xf4] sm:$0xf]
        %v256 = vld [vmem:[%s167 + $0xf8] sm:$0xf]
        %v257 = vld [vmem:[%s167 + $0xfc] sm:$0xf]
        %v258 = vld [vmem:[%s167 + $0x100] sm:$0xf]
        %v259 = vld [vmem:[%s167 + $0x104] sm:$0xf]
        %v260 = vld [vmem:[%s167 + $0x108] sm:$0xf]
        %v261 = vld [vmem:[%s167 + $0x10c] sm:$0xf]
        %v262 = vld [vmem:[%s167 + $0x110] sm:$0xf]
        %v263 = vld [vmem:[%s167 + $0x114] sm:$0xf]
        %v264 = vld [vmem:[%s167 + $0x118] sm:$0xf]
        %v265 = vld [vmem:[%s167 + $0x11c] sm:$0xf]
        %v266 = vld [vmem:[%s167 + $0x120] sm:$0xf]
        %v267 = vld [vmem:[%s167 + $0x124] sm:$0xf]
        %v268 = vld [vmem:[%s167 + $0x128] sm:$0xf]
        %v269 = vld [vmem:[%s167 + $0x12c] sm:$0xf]
        %v270 = vld [vmem:[%s167 + $0x130] sm:$0xf]
        %v271 = vld [vmem:[%s167 + $0x134] sm:$0xf]
        %v272 = vld [vmem:[%s167 + $0x138] sm:$0xf]
        %v273 = vld [vmem:[%s167 + $0x13c] sm:$0xf]
        %v274 = vld [vmem:[%s167 + $0x140] sm:$0xf]
        %v275 = vld [vmem:[%s167 + $0x144] sm:$0xf]
        %v276 = vld [vmem:[%s167 + $0x148] sm:$0xf]
        %v277 = vld [vmem:[%s167 + $0x14c] sm:$0xf]
        %v278 = vld [vmem:[%s167 + $0x150] sm:$0xf]
        %v279 = vld [vmem:[%s167 + $0x154] sm:$0xf]
        %v280 = vld [vmem:[%s167 + $0x158] sm:$0xf]
        %v281 = vld [vmem:[%s167 + $0x15c] sm:$0xf]
        %v282 = vld [vmem:[%s167 + $0x160] sm:$0xf]
        %v283 = vld [vmem:[%s167 + $0x164] sm:$0xf]
        %v284 = vld [vmem:[%s167 + $0x168] sm:$0xf]
        %v285 = vld [vmem:[%s167 + $0x16c] sm:$0xf]
        %v286 = vld [vmem:[%s167 + $0x170] sm:$0xf]
        %v287 = vld [vmem:[%s167 + $0x174] sm:$0xf]
        %v288 = vld [vmem:[%s167 + $0x178] sm:$0xf]
        %v289 = vld [vmem:[%s167 + $0x17c] sm:$0xf]
        %v290 = vld [vmem:[%s167 + $0x180] sm:$0xf]
        %v291 = vld [vmem:[%s167 + $0x184] sm:$0xf]
        %v292 = vld [vmem:[%s167 + $0x188] sm:$0xf]
        %v293 = vld [vmem:[%s167 + $0x18c] sm:$0xf]
        %v294 = vld [vmem:[%s167 + $0x190] sm:$0xf]
        %v295 = vld [vmem:[%s167 + $0x194] sm:$0xf]
        %v296 = vld [vmem:[%s167 + $0x198] sm:$0xf]
        %v297 = vld [vmem:[%s167 + $0x19c] sm:$0xf]
        %v298 = vld [vmem:[%s167 + $0x1a0] sm:$0xf]
        %v299 = vld [vmem:[%s167 + $0x1a4] sm:$0xf]
        %v300 = vld [vmem:[%s167 + $0x1a8] sm:$0xf]
        %v301 = vld [vmem:[%s167 + $0x1ac] sm:$0xf]
        %v302 = vld [vmem:[%s167 + $0x1b0] sm:$0xf]
        %v303 = vld [vmem:[%s167 + $0x1b4] sm:$0xf]
        %v304 = vld [vmem:[%s167 + $0x1b8] sm:$0xf]
        %v305 = vld [vmem:[%s167 + $0x1bc] sm:$0xf]
        %v306 = vld [vmem:[%s167 + $0x1c0] sm:$0xf]
        %v307 = vld [vmem:[%s167 + $0x1c4] sm:$0xf]
        %v308 = vld [vmem:[%s167 + $0x1c8] sm:$0xf]
        %v309 = vld [vmem:[%s167 + $0x1cc] sm:$0xf]
        %v310 = vld [vmem:[%s167 + $0x1d0] sm:$0xf]
        %v311 = vld [vmem:[%s167 + $0x1d4] sm:$0xf]
        %v312 = vld [vmem:[%s167 + $0x1d8] sm:$0xf]
        %v313 = vld [vmem:[%s167 + $0x1dc] sm:$0xf]
        %v314 = vld [vmem:[%s167 + $0x1e0] sm:$0xf]
        %v315 = vld [vmem:[%s167 + $0x1e4] sm:$0xf]
        %v316 = vld [vmem:[%s167 + $0x1e8] sm:$0xf]
        %v317 = vld [vmem:[%s167 + $0x1ec] sm:$0xf]
        %v318 = vld [vmem:[%s167 + $0x1f0] sm:$0xf]
        %v319 = vld [vmem:[%s167 + $0x1f4] sm:$0xf]
        %v320 = vld [vmem:[%s167 + $0x1f8] sm:$0xf]
        %v321 = vld [vmem:[%s167 + $0x1fc] sm:$0xf]
        %v322 = vld [vmem:[%s1] sm:$0xf]
        %v323 = vld [vmem:[%s1 + $0x4] sm:$0xf]
        %v324 = vld [vmem:[%s1 + $0x8] sm:$0xf]
        %v325 = vld [vmem:[%s1 + $0xc] sm:$0x1]
        %v326 = vld [vmem:[%s2] sm:$0x1]
        %v328 = vperm.slane %v326, 0
        %v458 = vunpack.c.l.b16 %v194
        %v459 = vunpack.c.l.b16 %v195
        %v460 = vunpack.c.l.b16 %v196
        %v461 = vunpack.c.l.b16 %v197
        %v462 = vunpack.c.l.b16 %v198
        %v463 = vunpack.c.l.b16 %v199
        %v464 = vunpack.c.l.b16 %v200
        %v465 = vunpack.c.l.b16 %v201
        %v466 = vunpack.c.l.b16 %v202
        %v467 = vunpack.c.l.b16 %v203
        %v468 = vunpack.c.l.b16 %v204
        %v469 = vunpack.c.l.b16 %v205
        %v470 = vunpack.c.l.b16 %v206
        %v471 = vunpack.c.l.b16 %v207
        %v472 = vunpack.c.l.b16 %v208
        %v473 = vunpack.c.l.b16 %v209
        %v474 = vunpack.c.l.b16 %v210
        %v475 = vunpack.c.l.b16 %v211
        %v476 = vunpack.c.l.b16 %v212
        %v477 = vunpack.c.l.b16 %v213
        %v478 = vunpack.c.l.b16 %v214
        %v479 = vunpack.c.l.b16 %v215
        %v480 = vunpack.c.l.b16 %v216
        %v481 = vunpack.c.l.b16 %v217
        %v482 = vunpack.c.l.b16 %v218
        %v483 = vunpack.c.l.b16 %v219
        %v484 = vunpack.c.l.b16 %v220
        %v485 = vunpack.c.l.b16 %v221
        %v486 = vunpack.c.l.b16 %v222
        %v487 = vunpack.c.l.b16 %v223
        %v488 = vunpack.c.l.b16 %v224
        %v489 = vunpack.c.l.b16 %v225
        %v490 = vunpack.c.l.b16 %v226
        %v491 = vunpack.c.l.b16 %v227
        %v492 = vunpack.c.l.b16 %v228
        %v493 = vunpack.c.l.b16 %v229
        %v494 = vunpack.c.l.b16 %v230
        %v495 = vunpack.c.l.b16 %v231
        %v496 = vunpack.c.l.b16 %v232
        %v497 = vunpack.c.l.b16 %v233
        %v498 = vunpack.c.l.b16 %v234
        %v499 = vunpack.c.l.b16 %v235
        %v500 = vunpack.c.l.b16 %v236
        %v501 = vunpack.c.l.b16 %v237
        %v502 = vunpack.c.l.b16 %v238
        %v503 = vunpack.c.l.b16 %v239
        %v504 = vunpack.c.l.b16 %v240
        %v505 = vunpack.c.l.b16 %v241
        %v506 = vunpack.c.l.b16 %v242
        %v507 = vunpack.c.l.b16 %v243
        %v508 = vunpack.c.l.b16 %v244
        %v509 = vunpack.c.l.b16 %v245
        %v510 = vunpack.c.l.b16 %v246
        %v511 = vunpack.c.l.b16 %v247
        %v512 = vunpack.c.l.b16 %v248
        %v513 = vunpack.c.l.b16 %v249
        %v514 = vunpack.c.l.b16 %v250
        %v515 = vunpack.c.l.b16 %v251
        %v516 = vunpack.c.l.b16 %v252
        %v517 = vunpack.c.l.b16 %v253
        %v518 = vunpack.c.l.b16 %v254
        %v519 = vunpack.c.l.b16 %v255
        %v520 = vunpack.c.l.b16 %v256
        %v521 = vunpack.c.l.b16 %v257
        %v522 = vunpack.c.l.b16 %v258
        %v523 = vunpack.c.l.b16 %v259
        %v524 = vunpack.c.l.b16 %v260
        %v525 = vunpack.c.l.b16 %v261
        %v526 = vunpack.c.l.b16 %v262
        %v527 = vunpack.c.l.b16 %v263
        %v528 = vunpack.c.l.b16 %v264
        %v529 = vunpack.c.l.b16 %v265
        %v530 = vunpack.c.l.b16 %v266
        %v531 = vunpack.c.l.b16 %v267
        %v532 = vunpack.c.l.b16 %v268
        %v533 = vunpack.c.l.b16 %v269
        %v534 = vunpack.c.l.b16 %v270
        %v535 = vunpack.c.l.b16 %v271
        %v536 = vunpack.c.l.b16 %v272
        %v537 = vunpack.c.l.b16 %v273
        %v538 = vunpack.c.l.b16 %v274
        %v539 = vunpack.c.l.b16 %v275
        %v540 = vunpack.c.l.b16 %v276
        %v541 = vunpack.c.l.b16 %v277
        %v542 = vunpack.c.l.b16 %v278
        %v543 = vunpack.c.l.b16 %v279
        %v544 = vunpack.c.l.b16 %v280
        %v545 = vunpack.c.l.b16 %v281
        %v546 = vunpack.c.l.b16 %v282
        %v547 = vunpack.c.l.b16 %v283
        %v548 = vunpack.c.l.b16 %v284
        %v549 = vunpack.c.l.b16 %v285
        %v550 = vunpack.c.l.b16 %v286
        %v551 = vunpack.c.l.b16 %v287
        %v552 = vunpack.c.l.b16 %v288
        %v553 = vunpack.c.l.b16 %v289
        %v554 = vunpack.c.l.b16 %v290
        %v555 = vunpack.c.l.b16 %v291
        %v556 = vunpack.c.l.b16 %v292
        %v557 = vunpack.c.l.b16 %v293
        %v558 = vunpack.c.l.b16 %v294
        %v559 = vunpack.c.l.b16 %v295
        %v560 = vunpack.c.l.b16 %v296
        %v561 = vunpack.c.l.b16 %v297
        %v562 = vunpack.c.l.b16 %v298
        %v563 = vunpack.c.l.b16 %v299
        %v564 = vunpack.c.l.b16 %v300
        %v565 = vunpack.c.l.b16 %v301
        %v566 = vunpack.c.l.b16 %v302
        %v567 = vunpack.c.l.b16 %v303
        %v568 = vunpack.c.l.b16 %v304
        %v569 = vunpack.c.l.b16 %v305
        %v570 = vunpack.c.l.b16 %v306
        %v571 = vunpack.c.l.b16 %v307
        %v572 = vunpack.c.l.b16 %v308
        %v573 = vunpack.c.l.b16 %v309
        %v574 = vunpack.c.l.b16 %v310
        %v575 = vunpack.c.l.b16 %v311
        %v576 = vunpack.c.l.b16 %v312
        %v577 = vunpack.c.l.b16 %v313
        %v578 = vunpack.c.l.b16 %v314
        %v579 = vunpack.c.l.b16 %v315
        %v580 = vunpack.c.l.b16 %v316
        %v581 = vunpack.c.l.b16 %v317
        %v582 = vunpack.c.l.b16 %v318
        %v583 = vunpack.c.l.b16 %v319
        %v584 = vunpack.c.l.b16 %v320
        %v585 = vunpack.c.l.b16 %v321
        %v586 = vpack.c.b16 %v459, %v458
        %v587 = vpack.c.b16 %v461, %v460
        %v588 = vpack.c.b16 %v463, %v462
        %v589 = vpack.c.b16 %v465, %v464
        %v590 = vpack.c.b16 %v467, %v466
        %v591 = vpack.c.b16 %v469, %v468
        %v592 = vpack.c.b16 %v471, %v470
        %v593 = vpack.c.b16 %v473, %v472
        %v594 = vpack.c.b16 %v475, %v474
        %v595 = vpack.c.b16 %v477, %v476
        %v596 = vpack.c.b16 %v479, %v478
        %v597 = vpack.c.b16 %v481, %v480
        %v598 = vpack.c.b16 %v483, %v482
        %v599 = vpack.c.b16 %v485, %v484
        %v600 = vpack.c.b16 %v487, %v486
        %v601 = vpack.c.b16 %v489, %v488
        %v602 = vpack.c.b16 %v491, %v490
        %v603 = vpack.c.b16 %v493, %v492
        %v604 = vpack.c.b16 %v495, %v494
        %v605 = vpack.c.b16 %v497, %v496
        %v606 = vpack.c.b16 %v499, %v498
        %v607 = vpack.c.b16 %v501, %v500
        %v608 = vpack.c.b16 %v503, %v502
        %v609 = vpack.c.b16 %v505, %v504
        %v610 = vpack.c.b16 %v507, %v506
        %v611 = vpack.c.b16 %v509, %v508
        %v612 = vpack.c.b16 %v511, %v510
        %v613 = vpack.c.b16 %v513, %v512
        %v614 = vpack.c.b16 %v515, %v514
        %v615 = vpack.c.b16 %v517, %v516
        %v616 = vpack.c.b16 %v519, %v518
        %v617 = vpack.c.b16 %v521, %v520
        %v618 = vpack.c.b16 %v523, %v522
        %v619 = vpack.c.b16 %v525, %v524
        %v620 = vpack.c.b16 %v527, %v526
        %v621 = vpack.c.b16 %v529, %v528
        %v622 = vpack.c.b16 %v531, %v530
        %v623 = vpack.c.b16 %v533, %v532
        %v624 = vpack.c.b16 %v535, %v534
        %v625 = vpack.c.b16 %v537, %v536
        %v626 = vpack.c.b16 %v539, %v538
        %v627 = vpack.c.b16 %v541, %v540
        %v628 = vpack.c.b16 %v543, %v542
        %v629 = vpack.c.b16 %v545, %v544
        %v630 = vpack.c.b16 %v547, %v546
        %v631 = vpack.c.b16 %v549, %v548
        %v632 = vpack.c.b16 %v551, %v550
        %v633 = vpack.c.b16 %v553, %v552
        %v634 = vpack.c.b16 %v555, %v554
        %v635 = vpack.c.b16 %v557, %v556
        %v636 = vpack.c.b16 %v559, %v558
        %v637 = vpack.c.b16 %v561, %v560
        %v638 = vpack.c.b16 %v563, %v562
        %v639 = vpack.c.b16 %v565, %v564
        %v640 = vpack.c.b16 %v567, %v566
        %v641 = vpack.c.b16 %v569, %v568
        %v642 = vpack.c.b16 %v571, %v570
        %v643 = vpack.c.b16 %v573, %v572
        %v644 = vpack.c.b16 %v575, %v574
        %v645 = vpack.c.b16 %v577, %v576
        %v646 = vpack.c.b16 %v579, %v578
        %v647 = vpack.c.b16 %v581, %v580
        %v648 = vpack.c.b16 %v583, %v582
        %v649 = vpack.c.b16 %v585, %v584
        %v654 = vunpack.c.l.b16 %v322
        %v655 = vunpack.c.l.b16 %v323
        %v656 = vunpack.c.l.b16 %v324
        %v657 = vunpack.c.l.b16 %v325
        %v658 = vpack.c.b16 %v655, %v654
        %v659 = vpack.c.b16 %v657, %v656
        %vm661 = vcmask 203776
        %v663 = vsel %vm661, %v586, 0
        %v666 = vsel %vm661, %v587, 0
        %v669 = vsel %vm661, %v588, 0
        %v672 = vsel %vm661, %v589, 0
        %v675 = vsel %vm661, %v590, 0
        %v678 = vsel %vm661, %v591, 0
        %v681 = vsel %vm661, %v592, 0
        %v684 = vsel %vm661, %v593, 0
        %v687 = vsel %vm661, %v594, 0
        %v690 = vsel %vm661, %v595, 0
        %v693 = vsel %vm661, %v596, 0
        %v696 = vsel %vm661, %v597, 0
        %v699 = vsel %vm661, %v598, 0
        %v702 = vsel %vm661, %v599, 0
        %v705 = vsel %vm661, %v600, 0
        %v708 = vsel %vm661, %v601, 0
        %v711 = vsel %vm661, %v602, 0
        %v714 = vsel %vm661, %v603, 0
        %v717 = vsel %vm661, %v604, 0
        %v720 = vsel %vm661, %v605, 0
        %v723 = vsel %vm661, %v606, 0
        %v726 = vsel %vm661, %v607, 0
        %v729 = vsel %vm661, %v608, 0
        %v732 = vsel %vm661, %v609, 0
        %v735 = vsel %vm661, %v610, 0
        %v738 = vsel %vm661, %v611, 0
        %v741 = vsel %vm661, %v612, 0
        %v744 = vsel %vm661, %v613, 0
        %v747 = vsel %vm661, %v614, 0
        %v750 = vsel %vm661, %v615, 0
        %v753 = vsel %vm661, %v616, 0
        %v756 = vsel %vm661, %v617, 0
        %v759 = vsel %vm661, %v618, 0
        %v762 = vsel %vm661, %v619, 0
        %v765 = vsel %vm661, %v620, 0
        %v768 = vsel %vm661, %v621, 0
        %v771 = vsel %vm661, %v622, 0
        %v774 = vsel %vm661, %v623, 0
        %v777 = vsel %vm661, %v624, 0
        %v780 = vsel %vm661, %v625, 0
        %v783 = vsel %vm661, %v626, 0
        %v786 = vsel %vm661, %v627, 0
        %v789 = vsel %vm661, %v628, 0
        %v792 = vsel %vm661, %v629, 0
        %v795 = vsel %vm661, %v630, 0
        %v798 = vsel %vm661, %v631, 0
        %v801 = vsel %vm661, %v632, 0
        %v804 = vsel %vm661, %v633, 0
        %v807 = vsel %vm661, %v634, 0
        %v810 = vsel %vm661, %v635, 0
        %v813 = vsel %vm661, %v636, 0
        %v816 = vsel %vm661, %v637, 0
        %v819 = vsel %vm661, %v638, 0
        %v822 = vsel %vm661, %v639, 0
        %v825 = vsel %vm661, %v640, 0
        %v828 = vsel %vm661, %v641, 0
        %v831 = vsel %vm661, %v642, 0
        %v834 = vsel %vm661, %v643, 0
        %v837 = vsel %vm661, %v644, 0
        %v840 = vsel %vm661, %v645, 0
        %v843 = vsel %vm661, %v646, 0
        %v846 = vsel %vm661, %v647, 0
        %v849 = vsel %vm661, %v648, 0
        %v852 = vsel %vm661, %v649, 0
        %vm854 = vcmask 1043456
        %vm855 = vcmask 1044480
        %v856 = vsel %vm854, 4294967295, 65535
        %v857 = vsel %vm855, %v856, 0
        %v859 = vand.u32 %v659, %v857
        %861 = vmatpush.bf16.msra.mxu0 0
        %862 = vmatpush.bf16.msra.mxu0 0
        %863 = vmatpush.bf16.msra.mxu0 0
        %864 = vmatpush.bf16.msra.mxu0 0
        %865 = vmatpush.bf16.msra.mxu0 0
        %866 = vmatpush.bf16.msra.mxu0 0
        %867 = vmatpush.bf16.msra.mxu0 %v859
        %868 = vmatpush.bf16.msra.mxu0 %v658
        %869 = vmatmul.bf16.gmra.mxu0 %v663
        %v870 = vpop.f32.mrf.mxu0
        %v871 = vadd.f32 %v328, %v870
        %v872 = vpop.f32.mrf.mxu0
        %v873 = vadd.f32 %v328, %v872
        %874 = vmatmul.bf16.gmra.mxu0 %v666
        %v875 = vpop.f32.mrf.mxu0
        %v876 = vadd.f32 %v328, %v875
        %v877 = vpop.f32.mrf.mxu0
        %v878 = vadd.f32 %v328, %v877
        %879 = vmatmul.bf16.gmra.mxu0 %v669
        %v880 = vpop.f32.mrf.mxu0
        %v881 = vadd.f32 %v328, %v880
        %v882 = vpop.f32.mrf.mxu0
        %v883 = vadd.f32 %v328, %v882
        %884 = vmatmul.bf16.gmra.mxu0 %v672
        %v885 = vpop.f32.mrf.mxu0
        %v886 = vadd.f32 %v328, %v885
        %v887 = vpop.f32.mrf.mxu0
        %v888 = vadd.f32 %v328, %v887
        %889 = vmatmul.bf16.gmra.mxu0 %v675
        %v890 = vpop.f32.mrf.mxu0
        %v891 = vadd.f32 %v328, %v890
        %v892 = vpop.f32.mrf.mxu0
        %v893 = vadd.f32 %v328, %v892
        %894 = vmatmul.bf16.gmra.mxu0 %v678
        %v895 = vpop.f32.mrf.mxu0
        %v896 = vadd.f32 %v328, %v895
        %v897 = vpop.f32.mrf.mxu0
        %v898 = vadd.f32 %v328, %v897
        %899 = vmatmul.bf16.gmra.mxu0 %v681
        %v900 = vpop.f32.mrf.mxu0
        %v901 = vadd.f32 %v328, %v900
        %v902 = vpop.f32.mrf.mxu0
        %v903 = vadd.f32 %v328, %v902
        %904 = vmatmul.bf16.gmra.mxu0 %v684
        %v905 = vpop.f32.mrf.mxu0
        %v906 = vadd.f32 %v328, %v905
        %v907 = vpop.f32.mrf.mxu0
        %v908 = vadd.f32 %v328, %v907
        %909 = vmatmul.bf16.gmra.mxu0 %v687
        %v910 = vpop.f32.mrf.mxu0
        %v911 = vadd.f32 %v328, %v910
        %v912 = vpop.f32.mrf.mxu0
        %v913 = vadd.f32 %v328, %v912
        %914 = vmatmul.bf16.gmra.mxu0 %v690
        %v915 = vpop.f32.mrf.mxu0
        %v916 = vadd.f32 %v328, %v915
        %v917 = vpop.f32.mrf.mxu0
        %v918 = vadd.f32 %v328, %v917
        %919 = vmatmul.bf16.gmra.mxu0 %v693
        %v920 = vpop.f32.mrf.mxu0
        %v921 = vadd.f32 %v328, %v920
        %v922 = vpop.f32.mrf.mxu0
        %v923 = vadd.f32 %v328, %v922
        %924 = vmatmul.bf16.gmra.mxu0 %v696
        %v925 = vpop.f32.mrf.mxu0
        %v926 = vadd.f32 %v328, %v925
        %v927 = vpop.f32.mrf.mxu0
        %v928 = vadd.f32 %v328, %v927
        %929 = vmatmul.bf16.gmra.mxu0 %v699
        %v930 = vpop.f32.mrf.mxu0
        %v931 = vadd.f32 %v328, %v930
        %v932 = vpop.f32.mrf.mxu0
        %v933 = vadd.f32 %v328, %v932
        %934 = vmatmul.bf16.gmra.mxu0 %v702
        %v935 = vpop.f32.mrf.mxu0
        %v936 = vadd.f32 %v328, %v935
        %v937 = vpop.f32.mrf.mxu0
        %v938 = vadd.f32 %v328, %v937
        %939 = vmatmul.bf16.gmra.mxu0 %v705
        %v940 = vpop.f32.mrf.mxu0
        %v941 = vadd.f32 %v328, %v940
        %v942 = vpop.f32.mrf.mxu0
        %v943 = vadd.f32 %v328, %v942
        %944 = vmatmul.bf16.gmra.mxu0 %v708
        %v945 = vpop.f32.mrf.mxu0
        %v946 = vadd.f32 %v328, %v945
        %v947 = vpop.f32.mrf.mxu0
        %v948 = vadd.f32 %v328, %v947
        %949 = vmatmul.bf16.gmra.mxu0 %v711
        %v950 = vpop.f32.mrf.mxu0
        %v951 = vadd.f32 %v328, %v950
        %v952 = vpop.f32.mrf.mxu0
        %v953 = vadd.f32 %v328, %v952
        %954 = vmatmul.bf16.gmra.mxu0 %v714
        %v955 = vpop.f32.mrf.mxu0
        %v956 = vadd.f32 %v328, %v955
        %v957 = vpop.f32.mrf.mxu0
        %v958 = vadd.f32 %v328, %v957
        %959 = vmatmul.bf16.gmra.mxu0 %v717
        %v960 = vpop.f32.mrf.mxu0
        %v961 = vadd.f32 %v328, %v960
        %v962 = vpop.f32.mrf.mxu0
        %v963 = vadd.f32 %v328, %v962
        %964 = vmatmul.bf16.gmra.mxu0 %v720
        %v965 = vpop.f32.mrf.mxu0
        %v966 = vadd.f32 %v328, %v965
        %v967 = vpop.f32.mrf.mxu0
        %v968 = vadd.f32 %v328, %v967
        %969 = vmatmul.bf16.gmra.mxu0 %v723
        %v970 = vpop.f32.mrf.mxu0
        %v971 = vadd.f32 %v328, %v970
        %v972 = vpop.f32.mrf.mxu0
        %v973 = vadd.f32 %v328, %v972
        %974 = vmatmul.bf16.gmra.mxu0 %v726
        %v975 = vpop.f32.mrf.mxu0
        %v976 = vadd.f32 %v328, %v975
        %v977 = vpop.f32.mrf.mxu0
        %v978 = vadd.f32 %v328, %v977
        %979 = vmatmul.bf16.gmra.mxu0 %v729
        %v980 = vpop.f32.mrf.mxu0
        %v981 = vadd.f32 %v328, %v980
        %v982 = vpop.f32.mrf.mxu0
        %v983 = vadd.f32 %v328, %v982
        %984 = vmatmul.bf16.gmra.mxu0 %v732
        %v985 = vpop.f32.mrf.mxu0
        %v986 = vadd.f32 %v328, %v985
        %v987 = vpop.f32.mrf.mxu0
        %v988 = vadd.f32 %v328, %v987
        %989 = vmatmul.bf16.gmra.mxu0 %v735
        %v990 = vpop.f32.mrf.mxu0
        %v991 = vadd.f32 %v328, %v990
        %v992 = vpop.f32.mrf.mxu0
        %v993 = vadd.f32 %v328, %v992
        %994 = vmatmul.bf16.gmra.mxu0 %v738
        %v995 = vpop.f32.mrf.mxu0
        %v996 = vadd.f32 %v328, %v995
        %v997 = vpop.f32.mrf.mxu0
        %v998 = vadd.f32 %v328, %v997
        %999 = vmatmul.bf16.gmra.mxu0 %v741
        %v1000 = vpop.f32.mrf.mxu0
        %v1001 = vadd.f32 %v328, %v1000
        %v1002 = vpop.f32.mrf.mxu0
        %v1003 = vadd.f32 %v328, %v1002
        %1004 = vmatmul.bf16.gmra.mxu0 %v744
        %v1005 = vpop.f32.mrf.mxu0
        %v1006 = vadd.f32 %v328, %v1005
        %v1007 = vpop.f32.mrf.mxu0
        %v1008 = vadd.f32 %v328, %v1007
        %1009 = vmatmul.bf16.gmra.mxu0 %v747
        %v1010 = vpop.f32.mrf.mxu0
        %v1011 = vadd.f32 %v328, %v1010
        %v1012 = vpop.f32.mrf.mxu0
        %v1013 = vadd.f32 %v328, %v1012
        %1014 = vmatmul.bf16.gmra.mxu0 %v750
        %v1015 = vpop.f32.mrf.mxu0
        %v1016 = vadd.f32 %v328, %v1015
        %v1017 = vpop.f32.mrf.mxu0
        %v1018 = vadd.f32 %v328, %v1017
        %1019 = vmatmul.bf16.gmra.mxu0 %v753
        %v1020 = vpop.f32.mrf.mxu0
        %v1021 = vadd.f32 %v328, %v1020
        %v1022 = vpop.f32.mrf.mxu0
        %v1023 = vadd.f32 %v328, %v1022
        %1024 = vmatmul.bf16.gmra.mxu0 %v756
        %v1025 = vpop.f32.mrf.mxu0
        %v1026 = vadd.f32 %v328, %v1025
        %v1027 = vpop.f32.mrf.mxu0
        %v1028 = vadd.f32 %v328, %v1027
        %1029 = vmatmul.bf16.gmra.mxu0 %v759
        %v1030 = vpop.f32.mrf.mxu0
        %v1031 = vadd.f32 %v328, %v1030
        %v1032 = vpop.f32.mrf.mxu0
        %v1033 = vadd.f32 %v328, %v1032
        %1034 = vmatmul.bf16.gmra.mxu0 %v762
        %v1035 = vpop.f32.mrf.mxu0
        %v1036 = vadd.f32 %v328, %v1035
        %v1037 = vpop.f32.mrf.mxu0
        %v1038 = vadd.f32 %v328, %v1037
        %1039 = vmatmul.bf16.gmra.mxu0 %v765
        %v1040 = vpop.f32.mrf.mxu0
        %v1041 = vadd.f32 %v328, %v1040
        %v1042 = vpop.f32.mrf.mxu0
        %v1043 = vadd.f32 %v328, %v1042
        %1044 = vmatmul.bf16.gmra.mxu0 %v768
        %v1045 = vpop.f32.mrf.mxu0
        %v1046 = vadd.f32 %v328, %v1045
        %v1047 = vpop.f32.mrf.mxu0
        %v1048 = vadd.f32 %v328, %v1047
        %1049 = vmatmul.bf16.gmra.mxu0 %v771
        %v1050 = vpop.f32.mrf.mxu0
        %v1051 = vadd.f32 %v328, %v1050
        %v1052 = vpop.f32.mrf.mxu0
        %v1053 = vadd.f32 %v328, %v1052
        %1054 = vmatmul.bf16.gmra.mxu0 %v774
        %v1055 = vpop.f32.mrf.mxu0
        %v1056 = vadd.f32 %v328, %v1055
        %v1057 = vpop.f32.mrf.mxu0
        %v1058 = vadd.f32 %v328, %v1057
        %1059 = vmatmul.bf16.gmra.mxu0 %v777
        %v1060 = vpop.f32.mrf.mxu0
        %v1061 = vadd.f32 %v328, %v1060
        %v1062 = vpop.f32.mrf.mxu0
        %v1063 = vadd.f32 %v328, %v1062
        %1064 = vmatmul.bf16.gmra.mxu0 %v780
        %v1065 = vpop.f32.mrf.mxu0
        %v1066 = vadd.f32 %v328, %v1065
        %v1067 = vpop.f32.mrf.mxu0
        %v1068 = vadd.f32 %v328, %v1067
        %1069 = vmatmul.bf16.gmra.mxu0 %v783
        %v1070 = vpop.f32.mrf.mxu0
        %v1071 = vadd.f32 %v328, %v1070
        %v1072 = vpop.f32.mrf.mxu0
        %v1073 = vadd.f32 %v328, %v1072
        %1074 = vmatmul.bf16.gmra.mxu0 %v786
        %v1075 = vpop.f32.mrf.mxu0
        %v1076 = vadd.f32 %v328, %v1075
        %v1077 = vpop.f32.mrf.mxu0
        %v1078 = vadd.f32 %v328, %v1077
        %1079 = vmatmul.bf16.gmra.mxu0 %v789
        %v1080 = vpop.f32.mrf.mxu0
        %v1081 = vadd.f32 %v328, %v1080
        %v1082 = vpop.f32.mrf.mxu0
        %v1083 = vadd.f32 %v328, %v1082
        %1084 = vmatmul.bf16.gmra.mxu0 %v792
        %v1085 = vpop.f32.mrf.mxu0
        %v1086 = vadd.f32 %v328, %v1085
        %v1087 = vpop.f32.mrf.mxu0
        %v1088 = vadd.f32 %v328, %v1087
        %1089 = vmatmul.bf16.gmra.mxu0 %v795
        %v1090 = vpop.f32.mrf.mxu0
        %v1091 = vadd.f32 %v328, %v1090
        %v1092 = vpop.f32.mrf.mxu0
        %v1093 = vadd.f32 %v328, %v1092
        %1094 = vmatmul.bf16.gmra.mxu0 %v798
        %v1095 = vpop.f32.mrf.mxu0
        %v1096 = vadd.f32 %v328, %v1095
        %v1097 = vpop.f32.mrf.mxu0
        %v1098 = vadd.f32 %v328, %v1097
        %1099 = vmatmul.bf16.gmra.mxu0 %v801
        %v1100 = vpop.f32.mrf.mxu0
        %v1101 = vadd.f32 %v328, %v1100
        %v1102 = vpop.f32.mrf.mxu0
        %v1103 = vadd.f32 %v328, %v1102
        %1104 = vmatmul.bf16.gmra.mxu0 %v804
        %v1105 = vpop.f32.mrf.mxu0
        %v1106 = vadd.f32 %v328, %v1105
        %v1107 = vpop.f32.mrf.mxu0
        %v1108 = vadd.f32 %v328, %v1107
        %1109 = vmatmul.bf16.gmra.mxu0 %v807
        %v1110 = vpop.f32.mrf.mxu0
        %v1111 = vadd.f32 %v328, %v1110
        %v1112 = vpop.f32.mrf.mxu0
        %v1113 = vadd.f32 %v328, %v1112
        %1114 = vmatmul.bf16.gmra.mxu0 %v810
        %v1115 = vpop.f32.mrf.mxu0
        %v1116 = vadd.f32 %v328, %v1115
        %v1117 = vpop.f32.mrf.mxu0
        %v1118 = vadd.f32 %v328, %v1117
        %1119 = vmatmul.bf16.gmra.mxu0 %v813
        %v1120 = vpop.f32.mrf.mxu0
        %v1121 = vadd.f32 %v328, %v1120
        %v1122 = vpop.f32.mrf.mxu0
        %v1123 = vadd.f32 %v328, %v1122
        %1124 = vmatmul.bf16.gmra.mxu0 %v816
        %v1125 = vpop.f32.mrf.mxu0
        %v1126 = vadd.f32 %v328, %v1125
        %v1127 = vpop.f32.mrf.mxu0
        %v1128 = vadd.f32 %v328, %v1127
        %1129 = vmatmul.bf16.gmra.mxu0 %v819
        %v1130 = vpop.f32.mrf.mxu0
        %v1131 = vadd.f32 %v328, %v1130
        %v1132 = vpop.f32.mrf.mxu0
        %v1133 = vadd.f32 %v328, %v1132
        %1134 = vmatmul.bf16.gmra.mxu0 %v822
        %v1135 = vpop.f32.mrf.mxu0
        %v1136 = vadd.f32 %v328, %v1135
        %v1137 = vpop.f32.mrf.mxu0
        %v1138 = vadd.f32 %v328, %v1137
        %1139 = vmatmul.bf16.gmra.mxu0 %v825
        %v1140 = vpop.f32.mrf.mxu0
        %v1141 = vadd.f32 %v328, %v1140
        %v1142 = vpop.f32.mrf.mxu0
        %v1143 = vadd.f32 %v328, %v1142
        %1144 = vmatmul.bf16.gmra.mxu0 %v828
        %v1145 = vpop.f32.mrf.mxu0
        %v1146 = vadd.f32 %v328, %v1145
        %v1147 = vpop.f32.mrf.mxu0
        %v1148 = vadd.f32 %v328, %v1147
        %1149 = vmatmul.bf16.gmra.mxu0 %v831
        %v1150 = vpop.f32.mrf.mxu0
        %v1151 = vadd.f32 %v328, %v1150
        %v1152 = vpop.f32.mrf.mxu0
        %v1153 = vadd.f32 %v328, %v1152
        %1154 = vmatmul.bf16.gmra.mxu0 %v834
        %v1155 = vpop.f32.mrf.mxu0
        %v1156 = vadd.f32 %v328, %v1155
        %v1157 = vpop.f32.mrf.mxu0
        %v1158 = vadd.f32 %v328, %v1157
        %1159 = vmatmul.bf16.gmra.mxu0 %v837
        %v1160 = vpop.f32.mrf.mxu0
        %v1161 = vadd.f32 %v328, %v1160
        %v1162 = vpop.f32.mrf.mxu0
        %v1163 = vadd.f32 %v328, %v1162
        %1164 = vmatmul.bf16.gmra.mxu0 %v840
        %v1165 = vpop.f32.mrf.mxu0
        %v1166 = vadd.f32 %v328, %v1165
        %v1167 = vpop.f32.mrf.mxu0
        %v1168 = vadd.f32 %v328, %v1167
        %1169 = vmatmul.bf16.gmra.mxu0 %v843
        %v1170 = vpop.f32.mrf.mxu0
        %v1171 = vadd.f32 %v328, %v1170
        %v1172 = vpop.f32.mrf.mxu0
        %v1173 = vadd.f32 %v328, %v1172
        %1174 = vmatmul.bf16.gmra.mxu0 %v846
        %v1175 = vpop.f32.mrf.mxu0
        %v1176 = vadd.f32 %v328, %v1175
        %v1177 = vpop.f32.mrf.mxu0
        %v1178 = vadd.f32 %v328, %v1177
        %1179 = vmatmul.bf16.gmra.mxu0 %v849
        %v1180 = vpop.f32.mrf.mxu0
        %v1181 = vadd.f32 %v328, %v1180
        %v1182 = vpop.f32.mrf.mxu0
        %v1183 = vadd.f32 %v328, %v1182
        %1184 = vmatmul.bf16.gmra.mxu0 %v852
        %v1185 = vpop.f32.mrf.mxu0
        %v1186 = vadd.f32 %v328, %v1185
        %v1187 = vpop.f32.mrf.mxu0
        %v1188 = vadd.f32 %v328, %v1187
        %1189 = vdwg.mxu0
        %v1190 = vmul.f32 %v871, 0.2
        %v1191 = vmul.f32 %v873, 0.2
        %v1192 = vmul.f32 %v876, 0.2
        %v1193 = vmul.f32 %v878, 0.2
        %v1194 = vmul.f32 %v881, 0.2
        %v1195 = vmul.f32 %v883, 0.2
        %v1196 = vmul.f32 %v886, 0.2
        %v1197 = vmul.f32 %v888, 0.2
        %v1198 = vmul.f32 %v891, 0.2
        %v1199 = vmul.f32 %v893, 0.2
        %v1200 = vmul.f32 %v896, 0.2
        %v1201 = vmul.f32 %v898, 0.2
        %v1202 = vmul.f32 %v901, 0.2
        %v1203 = vmul.f32 %v903, 0.2
        %v1204 = vmul.f32 %v906, 0.2
        %v1205 = vmul.f32 %v908, 0.2
        %v1206 = vmul.f32 %v911, 0.2
        %v1207 = vmul.f32 %v913, 0.2
        %v1208 = vmul.f32 %v916, 0.2
        %v1209 = vmul.f32 %v918, 0.2
        %v1210 = vmul.f32 %v921, 0.2
        %v1211 = vmul.f32 %v923, 0.2
        %v1212 = vmul.f32 %v926, 0.2
        %v1213 = vmul.f32 %v928, 0.2
        %v1214 = vmul.f32 %v931, 0.2
        %v1215 = vmul.f32 %v933, 0.2
        %v1216 = vmul.f32 %v936, 0.2
        %v1217 = vmul.f32 %v938, 0.2
        %v1218 = vmul.f32 %v941, 0.2
        %v1219 = vmul.f32 %v943, 0.2
        %v1220 = vmul.f32 %v946, 0.2
        %v1221 = vmul.f32 %v948, 0.2
        %v1222 = vmul.f32 %v951, 0.2
        %v1223 = vmul.f32 %v953, 0.2
        %v1224 = vmul.f32 %v956, 0.2
        %v1225 = vmul.f32 %v958, 0.2
        %v1226 = vmul.f32 %v961, 0.2
        %v1227 = vmul.f32 %v963, 0.2
        %v1228 = vmul.f32 %v966, 0.2
        %v1229 = vmul.f32 %v968, 0.2
        %v1230 = vmul.f32 %v971, 0.2
        %v1231 = vmul.f32 %v973, 0.2
        %v1232 = vmul.f32 %v976, 0.2
        %v1233 = vmul.f32 %v978, 0.2
        %v1234 = vmul.f32 %v981, 0.2
        %v1235 = vmul.f32 %v983, 0.2
        %v1236 = vmul.f32 %v986, 0.2
        %v1237 = vmul.f32 %v988, 0.2
        %v1238 = vmul.f32 %v991, 0.2
        %v1239 = vmul.f32 %v993, 0.2
        %v1240 = vmul.f32 %v996, 0.2
        %v1241 = vmul.f32 %v998, 0.2
        %v1242 = vmul.f32 %v1001, 0.2
        %v1243 = vmul.f32 %v1003, 0.2
        %v1244 = vmul.f32 %v1006, 0.2
        %v1245 = vmul.f32 %v1008, 0.2
        %v1246 = vmul.f32 %v1011, 0.2
        %v1247 = vmul.f32 %v1013, 0.2
        %v1248 = vmul.f32 %v1016, 0.2
        %v1249 = vmul.f32 %v1018, 0.2
        %v1250 = vmul.f32 %v1021, 0.2
        %v1251 = vmul.f32 %v1023, 0.2
        %v1252 = vmul.f32 %v1026, 0.2
        %v1253 = vmul.f32 %v1028, 0.2
        %v1254 = vmul.f32 %v1031, 0.2
        %v1255 = vmul.f32 %v1033, 0.2
        %v1256 = vmul.f32 %v1036, 0.2
        %v1257 = vmul.f32 %v1038, 0.2
        %v1258 = vmul.f32 %v1041, 0.2
        %v1259 = vmul.f32 %v1043, 0.2
        %v1260 = vmul.f32 %v1046, 0.2
        %v1261 = vmul.f32 %v1048, 0.2
        %v1262 = vmul.f32 %v1051, 0.2
        %v1263 = vmul.f32 %v1053, 0.2
        %v1264 = vmul.f32 %v1056, 0.2
        %v1265 = vmul.f32 %v1058, 0.2
        %v1266 = vmul.f32 %v1061, 0.2
        %v1267 = vmul.f32 %v1063, 0.2
        %v1268 = vmul.f32 %v1066, 0.2
        %v1269 = vmul.f32 %v1068, 0.2
        %v1270 = vmul.f32 %v1071, 0.2
        %v1271 = vmul.f32 %v1073, 0.2
        %v1272 = vmul.f32 %v1076, 0.2
        %v1273 = vmul.f32 %v1078, 0.2
        %v1274 = vmul.f32 %v1081, 0.2
        %v1275 = vmul.f32 %v1083, 0.2
        %v1276 = vmul.f32 %v1086, 0.2
        %v1277 = vmul.f32 %v1088, 0.2
        %v1278 = vmul.f32 %v1091, 0.2
        %v1279 = vmul.f32 %v1093, 0.2
        %v1280 = vmul.f32 %v1096, 0.2
        %v1281 = vmul.f32 %v1098, 0.2
        %v1282 = vmul.f32 %v1101, 0.2
        %v1283 = vmul.f32 %v1103, 0.2
        %v1284 = vmul.f32 %v1106, 0.2
        %v1285 = vmul.f32 %v1108, 0.2
        %v1286 = vmul.f32 %v1111, 0.2
        %v1287 = vmul.f32 %v1113, 0.2
        %v1288 = vmul.f32 %v1116, 0.2
        %v1289 = vmul.f32 %v1118, 0.2
        %v1290 = vmul.f32 %v1121, 0.2
        %v1291 = vmul.f32 %v1123, 0.2
        %v1292 = vmul.f32 %v1126, 0.2
        %v1293 = vmul.f32 %v1128, 0.2
        %v1294 = vmul.f32 %v1131, 0.2
        %v1295 = vmul.f32 %v1133, 0.2
        %v1296 = vmul.f32 %v1136, 0.2
        %v1297 = vmul.f32 %v1138, 0.2
        %v1298 = vmul.f32 %v1141, 0.2
        %v1299 = vmul.f32 %v1143, 0.2
        %v1300 = vmul.f32 %v1146, 0.2
        %v1301 = vmul.f32 %v1148, 0.2
        %v1302 = vmul.f32 %v1151, 0.2
        %v1303 = vmul.f32 %v1153, 0.2
        %v1304 = vmul.f32 %v1156, 0.2
        %v1305 = vmul.f32 %v1158, 0.2
        %v1306 = vmul.f32 %v1161, 0.2
        %v1307 = vmul.f32 %v1163, 0.2
        %v1308 = vmul.f32 %v1166, 0.2
        %v1309 = vmul.f32 %v1168, 0.2
        %v1310 = vmul.f32 %v1171, 0.2
        %v1311 = vmul.f32 %v1173, 0.2
        %v1312 = vmul.f32 %v1176, 0.2
        %v1313 = vmul.f32 %v1178, 0.2
        %v1314 = vmul.f32 %v1181, 0.2
        %v1315 = vmul.f32 %v1183, 0.2
        %v1316 = vmul.f32 %v1186, 0.2
        %v1317 = vmul.f32 %v1188, 0.2
        %v1318 = vmax.f32 %v871, %v1190
        %v1319 = vmax.f32 %v873, %v1191
        %v1320 = vmax.f32 %v876, %v1192
        %v1321 = vmax.f32 %v878, %v1193
        %v1322 = vmax.f32 %v881, %v1194
        %v1323 = vmax.f32 %v883, %v1195
        %v1324 = vmax.f32 %v886, %v1196
        %v1325 = vmax.f32 %v888, %v1197
        %v1326 = vmax.f32 %v891, %v1198
        %v1327 = vmax.f32 %v893, %v1199
        %v1328 = vmax.f32 %v896, %v1200
        %v1329 = vmax.f32 %v898, %v1201
        %v1330 = vmax.f32 %v901, %v1202
        %v1331 = vmax.f32 %v903, %v1203
        %v1332 = vmax.f32 %v906, %v1204
        %v1333 = vmax.f32 %v908, %v1205
        %v1334 = vmax.f32 %v911, %v1206
        %v1335 = vmax.f32 %v913, %v1207
        %v1336 = vmax.f32 %v916, %v1208
        %v1337 = vmax.f32 %v918, %v1209
        %v1338 = vmax.f32 %v921, %v1210
        %v1339 = vmax.f32 %v923, %v1211
        %v1340 = vmax.f32 %v926, %v1212
        %v1341 = vmax.f32 %v928, %v1213
        %v1342 = vmax.f32 %v931, %v1214
        %v1343 = vmax.f32 %v933, %v1215
        %v1344 = vmax.f32 %v936, %v1216
        %v1345 = vmax.f32 %v938, %v1217
        %v1346 = vmax.f32 %v941, %v1218
        %v1347 = vmax.f32 %v943, %v1219
        %v1348 = vmax.f32 %v946, %v1220
        %v1349 = vmax.f32 %v948, %v1221
        %v1350 = vmax.f32 %v951, %v1222
        %v1351 = vmax.f32 %v953, %v1223
        %v1352 = vmax.f32 %v956, %v1224
        %v1353 = vmax.f32 %v958, %v1225
        %v1354 = vmax.f32 %v961, %v1226
        %v1355 = vmax.f32 %v963, %v1227
        %v1356 = vmax.f32 %v966, %v1228
        %v1357 = vmax.f32 %v968, %v1229
        %v1358 = vmax.f32 %v971, %v1230
        %v1359 = vmax.f32 %v973, %v1231
        %v1360 = vmax.f32 %v976, %v1232
        %v1361 = vmax.f32 %v978, %v1233
        %v1362 = vmax.f32 %v981, %v1234
        %v1363 = vmax.f32 %v983, %v1235
        %v1364 = vmax.f32 %v986, %v1236
        %v1365 = vmax.f32 %v988, %v1237
        %v1366 = vmax.f32 %v991, %v1238
        %v1367 = vmax.f32 %v993, %v1239
        %v1368 = vmax.f32 %v996, %v1240
        %v1369 = vmax.f32 %v998, %v1241
        %v1370 = vmax.f32 %v1001, %v1242
        %v1371 = vmax.f32 %v1003, %v1243
        %v1372 = vmax.f32 %v1006, %v1244
        %v1373 = vmax.f32 %v1008, %v1245
        %v1374 = vmax.f32 %v1011, %v1246
        %v1375 = vmax.f32 %v1013, %v1247
        %v1376 = vmax.f32 %v1016, %v1248
        %v1377 = vmax.f32 %v1018, %v1249
        %v1378 = vmax.f32 %v1021, %v1250
        %v1379 = vmax.f32 %v1023, %v1251
        %v1380 = vmax.f32 %v1026, %v1252
        %v1381 = vmax.f32 %v1028, %v1253
        %v1382 = vmax.f32 %v1031, %v1254
        %v1383 = vmax.f32 %v1033, %v1255
        %v1384 = vmax.f32 %v1036, %v1256
        %v1385 = vmax.f32 %v1038, %v1257
        %v1386 = vmax.f32 %v1041, %v1258
        %v1387 = vmax.f32 %v1043, %v1259
        %v1388 = vmax.f32 %v1046, %v1260
        %v1389 = vmax.f32 %v1048, %v1261
        %v1390 = vmax.f32 %v1051, %v1262
        %v1391 = vmax.f32 %v1053, %v1263
        %v1392 = vmax.f32 %v1056, %v1264
        %v1393 = vmax.f32 %v1058, %v1265
        %v1394 = vmax.f32 %v1061, %v1266
        %v1395 = vmax.f32 %v1063, %v1267
        %v1396 = vmax.f32 %v1066, %v1268
        %v1397 = vmax.f32 %v1068, %v1269
        %v1398 = vmax.f32 %v1071, %v1270
        %v1399 = vmax.f32 %v1073, %v1271
        %v1400 = vmax.f32 %v1076, %v1272
        %v1401 = vmax.f32 %v1078, %v1273
        %v1402 = vmax.f32 %v1081, %v1274
        %v1403 = vmax.f32 %v1083, %v1275
        %v1404 = vmax.f32 %v1086, %v1276
        %v1405 = vmax.f32 %v1088, %v1277
        %v1406 = vmax.f32 %v1091, %v1278
        %v1407 = vmax.f32 %v1093, %v1279
        %v1408 = vmax.f32 %v1096, %v1280
        %v1409 = vmax.f32 %v1098, %v1281
        %v1410 = vmax.f32 %v1101, %v1282
        %v1411 = vmax.f32 %v1103, %v1283
        %v1412 = vmax.f32 %v1106, %v1284
        %v1413 = vmax.f32 %v1108, %v1285
        %v1414 = vmax.f32 %v1111, %v1286
        %v1415 = vmax.f32 %v1113, %v1287
        %v1416 = vmax.f32 %v1116, %v1288
        %v1417 = vmax.f32 %v1118, %v1289
        %v1418 = vmax.f32 %v1121, %v1290
        %v1419 = vmax.f32 %v1123, %v1291
        %v1420 = vmax.f32 %v1126, %v1292
        %v1421 = vmax.f32 %v1128, %v1293
        %v1422 = vmax.f32 %v1131, %v1294
        %v1423 = vmax.f32 %v1133, %v1295
        %v1424 = vmax.f32 %v1136, %v1296
        %v1425 = vmax.f32 %v1138, %v1297
        %v1426 = vmax.f32 %v1141, %v1298
        %v1427 = vmax.f32 %v1143, %v1299
        %v1428 = vmax.f32 %v1146, %v1300
        %v1429 = vmax.f32 %v1148, %v1301
        %v1430 = vmax.f32 %v1151, %v1302
        %v1431 = vmax.f32 %v1153, %v1303
        %v1432 = vmax.f32 %v1156, %v1304
        %v1433 = vmax.f32 %v1158, %v1305
        %v1434 = vmax.f32 %v1161, %v1306
        %v1435 = vmax.f32 %v1163, %v1307
        %v1436 = vmax.f32 %v1166, %v1308
        %v1437 = vmax.f32 %v1168, %v1309
        %v1438 = vmax.f32 %v1171, %v1310
        %v1439 = vmax.f32 %v1173, %v1311
        %v1440 = vmax.f32 %v1176, %v1312
        %v1441 = vmax.f32 %v1178, %v1313
        %v1442 = vmax.f32 %v1181, %v1314
        %v1443 = vmax.f32 %v1183, %v1315
        %v1444 = vmax.f32 %v1186, %v1316
        %v1445 = vmax.f32 %v1188, %v1317
        %v1446 = vpack.c.bf16 %v1318, %v1318
        %v1447 = vpack.c.bf16 %v1319, %v1319
        %v1448 = vpack.c.bf16 %v1320, %v1320
        %v1449 = vpack.c.bf16 %v1321, %v1321
        %v1450 = vpack.c.bf16 %v1322, %v1322
        %v1451 = vpack.c.bf16 %v1323, %v1323
        %v1452 = vpack.c.bf16 %v1324, %v1324
        %v1453 = vpack.c.bf16 %v1325, %v1325
        %v1454 = vpack.c.bf16 %v1326, %v1326
        %v1455 = vpack.c.bf16 %v1327, %v1327
        %v1456 = vpack.c.bf16 %v1328, %v1328
        %v1457 = vpack.c.bf16 %v1329, %v1329
        %v1458 = vpack.c.bf16 %v1330, %v1330
        %v1459 = vpack.c.bf16 %v1331, %v1331
        %v1460 = vpack.c.bf16 %v1332, %v1332
        %v1461 = vpack.c.bf16 %v1333, %v1333
        %v1462 = vpack.c.bf16 %v1334, %v1334
        %v1463 = vpack.c.bf16 %v1335, %v1335
        %v1464 = vpack.c.bf16 %v1336, %v1336
        %v1465 = vpack.c.bf16 %v1337, %v1337
        %v1466 = vpack.c.bf16 %v1338, %v1338
        %v1467 = vpack.c.bf16 %v1339, %v1339
        %v1468 = vpack.c.bf16 %v1340, %v1340
        %v1469 = vpack.c.bf16 %v1341, %v1341
        %v1470 = vpack.c.bf16 %v1342, %v1342
        %v1471 = vpack.c.bf16 %v1343, %v1343
        %v1472 = vpack.c.bf16 %v1344, %v1344
        %v1473 = vpack.c.bf16 %v1345, %v1345
        %v1474 = vpack.c.bf16 %v1346, %v1346
        %v1475 = vpack.c.bf16 %v1347, %v1347
        %v1476 = vpack.c.bf16 %v1348, %v1348
        %v1477 = vpack.c.bf16 %v1349, %v1349
        %v1478 = vpack.c.bf16 %v1350, %v1350
        %v1479 = vpack.c.bf16 %v1351, %v1351
        %v1480 = vpack.c.bf16 %v1352, %v1352
        %v1481 = vpack.c.bf16 %v1353, %v1353
        %v1482 = vpack.c.bf16 %v1354, %v1354
        %v1483 = vpack.c.bf16 %v1355, %v1355
        %v1484 = vpack.c.bf16 %v1356, %v1356
        %v1485 = vpack.c.bf16 %v1357, %v1357
        %v1486 = vpack.c.bf16 %v1358, %v1358
        %v1487 = vpack.c.bf16 %v1359, %v1359
        %v1488 = vpack.c.bf16 %v1360, %v1360
        %v1489 = vpack.c.bf16 %v1361, %v1361
        %v1490 = vpack.c.bf16 %v1362, %v1362
        %v1491 = vpack.c.bf16 %v1363, %v1363
        %v1492 = vpack.c.bf16 %v1364, %v1364
        %v1493 = vpack.c.bf16 %v1365, %v1365
        %v1494 = vpack.c.bf16 %v1366, %v1366
        %v1495 = vpack.c.bf16 %v1367, %v1367
        %v1496 = vpack.c.bf16 %v1368, %v1368
        %v1497 = vpack.c.bf16 %v1369, %v1369
        %v1498 = vpack.c.bf16 %v1370, %v1370
        %v1499 = vpack.c.bf16 %v1371, %v1371
        %v1500 = vpack.c.bf16 %v1372, %v1372
        %v1501 = vpack.c.bf16 %v1373, %v1373
        %v1502 = vpack.c.bf16 %v1374, %v1374
        %v1503 = vpack.c.bf16 %v1375, %v1375
        %v1504 = vpack.c.bf16 %v1376, %v1376
        %v1505 = vpack.c.bf16 %v1377, %v1377
        %v1506 = vpack.c.bf16 %v1378, %v1378
        %v1507 = vpack.c.bf16 %v1379, %v1379
        %v1508 = vpack.c.bf16 %v1380, %v1380
        %v1509 = vpack.c.bf16 %v1381, %v1381
        %v1510 = vpack.c.bf16 %v1382, %v1382
        %v1511 = vpack.c.bf16 %v1383, %v1383
        %v1512 = vpack.c.bf16 %v1384, %v1384
        %v1513 = vpack.c.bf16 %v1385, %v1385
        %v1514 = vpack.c.bf16 %v1386, %v1386
        %v1515 = vpack.c.bf16 %v1387, %v1387
        %v1516 = vpack.c.bf16 %v1388, %v1388
        %v1517 = vpack.c.bf16 %v1389, %v1389
        %v1518 = vpack.c.bf16 %v1390, %v1390
        %v1519 = vpack.c.bf16 %v1391, %v1391
        %v1520 = vpack.c.bf16 %v1392, %v1392
        %v1521 = vpack.c.bf16 %v1393, %v1393
        %v1522 = vpack.c.bf16 %v1394, %v1394
        %v1523 = vpack.c.bf16 %v1395, %v1395
        %v1524 = vpack.c.bf16 %v1396, %v1396
        %v1525 = vpack.c.bf16 %v1397, %v1397
        %v1526 = vpack.c.bf16 %v1398, %v1398
        %v1527 = vpack.c.bf16 %v1399, %v1399
        %v1528 = vpack.c.bf16 %v1400, %v1400
        %v1529 = vpack.c.bf16 %v1401, %v1401
        %v1530 = vpack.c.bf16 %v1402, %v1402
        %v1531 = vpack.c.bf16 %v1403, %v1403
        %v1532 = vpack.c.bf16 %v1404, %v1404
        %v1533 = vpack.c.bf16 %v1405, %v1405
        %v1534 = vpack.c.bf16 %v1406, %v1406
        %v1535 = vpack.c.bf16 %v1407, %v1407
        %v1536 = vpack.c.bf16 %v1408, %v1408
        %v1537 = vpack.c.bf16 %v1409, %v1409
        %v1538 = vpack.c.bf16 %v1410, %v1410
        %v1539 = vpack.c.bf16 %v1411, %v1411
        %v1540 = vpack.c.bf16 %v1412, %v1412
        %v1541 = vpack.c.bf16 %v1413, %v1413
        %v1542 = vpack.c.bf16 %v1414, %v1414
        %v1543 = vpack.c.bf16 %v1415, %v1415
        %v1544 = vpack.c.bf16 %v1416, %v1416
        %v1545 = vpack.c.bf16 %v1417, %v1417
        %v1546 = vpack.c.bf16 %v1418, %v1418
        %v1547 = vpack.c.bf16 %v1419, %v1419
        %v1548 = vpack.c.bf16 %v1420, %v1420
        %v1549 = vpack.c.bf16 %v1421, %v1421
        %v1550 = vpack.c.bf16 %v1422, %v1422
        %v1551 = vpack.c.bf16 %v1423, %v1423
        %v1552 = vpack.c.bf16 %v1424, %v1424
        %v1553 = vpack.c.bf16 %v1425, %v1425
        %v1554 = vpack.c.bf16 %v1426, %v1426
        %v1555 = vpack.c.bf16 %v1427, %v1427
        %v1556 = vpack.c.bf16 %v1428, %v1428
        %v1557 = vpack.c.bf16 %v1429, %v1429
        %v1558 = vpack.c.bf16 %v1430, %v1430
        %v1559 = vpack.c.bf16 %v1431, %v1431
        %v1560 = vpack.c.bf16 %v1432, %v1432
        %v1561 = vpack.c.bf16 %v1433, %v1433
        %v1562 = vpack.c.bf16 %v1434, %v1434
        %v1563 = vpack.c.bf16 %v1435, %v1435
        %v1564 = vpack.c.bf16 %v1436, %v1436
        %v1565 = vpack.c.bf16 %v1437, %v1437
        %v1566 = vpack.c.bf16 %v1438, %v1438
        %v1567 = vpack.c.bf16 %v1439, %v1439
        %v1568 = vpack.c.bf16 %v1440, %v1440
        %v1569 = vpack.c.bf16 %v1441, %v1441
        %v1570 = vpack.c.bf16 %v1442, %v1442
        %v1571 = vpack.c.bf16 %v1443, %v1443
        %v1572 = vpack.c.bf16 %v1444, %v1444
        %v1573 = vpack.c.bf16 %v1445, %v1445
        %vm1574 = vcmask 257024
        %1575 = vst.msk [vmem:[%s190] sm:$0xf] %vm1574, %v1446
        %1576 = vst.msk [vmem:[%s190 + $0x4] sm:$0xf] %vm1574, %v1447
        %1577 = vst.msk [vmem:[%s190 + $0x8] sm:$0xf] %vm1574, %v1448
        %1578 = vst.msk [vmem:[%s190 + $0xc] sm:$0xf] %vm1574, %v1449
        %1579 = vst.msk [vmem:[%s190 + $0x10] sm:$0xf] %vm1574, %v1450
        %1580 = vst.msk [vmem:[%s190 + $0x14] sm:$0xf] %vm1574, %v1451
        %1581 = vst.msk [vmem:[%s190 + $0x18] sm:$0xf] %vm1574, %v1452
        %1582 = vst.msk [vmem:[%s190 + $0x1c] sm:$0xf] %vm1574, %v1453
        %1583 = vst.msk [vmem:[%s190 + $0x20] sm:$0xf] %vm1574, %v1454
        %1584 = vst.msk [vmem:[%s190 + $0x24] sm:$0xf] %vm1574, %v1455
        %1585 = vst.msk [vmem:[%s190 + $0x28] sm:$0xf] %vm1574, %v1456
        %1586 = vst.msk [vmem:[%s190 + $0x2c] sm:$0xf] %vm1574, %v1457
        %1587 = vst.msk [vmem:[%s190 + $0x30] sm:$0xf] %vm1574, %v1458
        %1588 = vst.msk [vmem:[%s190 + $0x34] sm:$0xf] %vm1574, %v1459
        %1589 = vst.msk [vmem:[%s190 + $0x38] sm:$0xf] %vm1574, %v1460
        %1590 = vst.msk [vmem:[%s190 + $0x3c] sm:$0xf] %vm1574, %v1461
        %1591 = vst.msk [vmem:[%s190 + $0x40] sm:$0xf] %vm1574, %v1462
        %1592 = vst.msk [vmem:[%s190 + $0x44] sm:$0xf] %vm1574, %v1463
        %1593 = vst.msk [vmem:[%s190 + $0x48] sm:$0xf] %vm1574, %v1464
        %1594 = vst.msk [vmem:[%s190 + $0x4c] sm:$0xf] %vm1574, %v1465
        %1595 = vst.msk [vmem:[%s190 + $0x50] sm:$0xf] %vm1574, %v1466
        %1596 = vst.msk [vmem:[%s190 + $0x54] sm:$0xf] %vm1574, %v1467
        %1597 = vst.msk [vmem:[%s190 + $0x58] sm:$0xf] %vm1574, %v1468
        %1598 = vst.msk [vmem:[%s190 + $0x5c] sm:$0xf] %vm1574, %v1469
        %1599 = vst.msk [vmem:[%s190 + $0x60] sm:$0xf] %vm1574, %v1470
        %1600 = vst.msk [vmem:[%s190 + $0x64] sm:$0xf] %vm1574, %v1471
        %1601 = vst.msk [vmem:[%s190 + $0x68] sm:$0xf] %vm1574, %v1472
        %1602 = vst.msk [vmem:[%s190 + $0x6c] sm:$0xf] %vm1574, %v1473
        %1603 = vst.msk [vmem:[%s190 + $0x70] sm:$0xf] %vm1574, %v1474
        %1604 = vst.msk [vmem:[%s190 + $0x74] sm:$0xf] %vm1574, %v1475
        %1605 = vst.msk [vmem:[%s190 + $0x78] sm:$0xf] %vm1574, %v1476
        %1606 = vst.msk [vmem:[%s190 + $0x7c] sm:$0xf] %vm1574, %v1477
        %1607 = vst.msk [vmem:[%s190 + $0x80] sm:$0xf] %vm1574, %v1478
        %1608 = vst.msk [vmem:[%s190 + $0x84] sm:$0xf] %vm1574, %v1479
        %1609 = vst.msk [vmem:[%s190 + $0x88] sm:$0xf] %vm1574, %v1480
        %1610 = vst.msk [vmem:[%s190 + $0x8c] sm:$0xf] %vm1574, %v1481
        %1611 = vst.msk [vmem:[%s190 + $0x90] sm:$0xf] %vm1574, %v1482
        %1612 = vst.msk [vmem:[%s190 + $0x94] sm:$0xf] %vm1574, %v1483
        %1613 = vst.msk [vmem:[%s190 + $0x98] sm:$0xf] %vm1574, %v1484
        %1614 = vst.msk [vmem:[%s190 + $0x9c] sm:$0xf] %vm1574, %v1485
        %1615 = vst.msk [vmem:[%s190 + $0xa0] sm:$0xf] %vm1574, %v1486
        %1616 = vst.msk [vmem:[%s190 + $0xa4] sm:$0xf] %vm1574, %v1487
        %1617 = vst.msk [vmem:[%s190 + $0xa8] sm:$0xf] %vm1574, %v1488
        %1618 = vst.msk [vmem:[%s190 + $0xac] sm:$0xf] %vm1574, %v1489
        %1619 = vst.msk [vmem:[%s190 + $0xb0] sm:$0xf] %vm1574, %v1490
        %1620 = vst.msk [vmem:[%s190 + $0xb4] sm:$0xf] %vm1574, %v1491
        %1621 = vst.msk [vmem:[%s190 + $0xb8] sm:$0xf] %vm1574, %v1492
        %1622 = vst.msk [vmem:[%s190 + $0xbc] sm:$0xf] %vm1574, %v1493
        %1623 = vst.msk [vmem:[%s190 + $0xc0] sm:$0xf] %vm1574, %v1494
        %1624 = vst.msk [vmem:[%s190 + $0xc4] sm:$0xf] %vm1574, %v1495
        %1625 = vst.msk [vmem:[%s190 + $0xc8] sm:$0xf] %vm1574, %v1496
        %1626 = vst.msk [vmem:[%s190 + $0xcc] sm:$0xf] %vm1574, %v1497
        %1627 = vst.msk [vmem:[%s190 + $0xd0] sm:$0xf] %vm1574, %v1498
        %1628 = vst.msk [vmem:[%s190 + $0xd4] sm:$0xf] %vm1574, %v1499
        %1629 = vst.msk [vmem:[%s190 + $0xd8] sm:$0xf] %vm1574, %v1500
        %1630 = vst.msk [vmem:[%s190 + $0xdc] sm:$0xf] %vm1574, %v1501
        %1631 = vst.msk [vmem:[%s190 + $0xe0] sm:$0xf] %vm1574, %v1502
        %1632 = vst.msk [vmem:[%s190 + $0xe4] sm:$0xf] %vm1574, %v1503
        %1633 = vst.msk [vmem:[%s190 + $0xe8] sm:$0xf] %vm1574, %v1504
        %1634 = vst.msk [vmem:[%s190 + $0xec] sm:$0xf] %vm1574, %v1505
        %1635 = vst.msk [vmem:[%s190 + $0xf0] sm:$0xf] %vm1574, %v1506
        %1636 = vst.msk [vmem:[%s190 + $0xf4] sm:$0xf] %vm1574, %v1507
        %1637 = vst.msk [vmem:[%s190 + $0xf8] sm:$0xf] %vm1574, %v1508
        %1638 = vst.msk [vmem:[%s190 + $0xfc] sm:$0xf] %vm1574, %v1509
        %1639 = vst.msk [vmem:[%s190 + $0x100] sm:$0xf] %vm1574, %v1510
        %1640 = vst.msk [vmem:[%s190 + $0x104] sm:$0xf] %vm1574, %v1511
        %1641 = vst.msk [vmem:[%s190 + $0x108] sm:$0xf] %vm1574, %v1512
        %1642 = vst.msk [vmem:[%s190 + $0x10c] sm:$0xf] %vm1574, %v1513
        %1643 = vst.msk [vmem:[%s190 + $0x110] sm:$0xf] %vm1574, %v1514
        %1644 = vst.msk [vmem:[%s190 + $0x114] sm:$0xf] %vm1574, %v1515
        %1645 = vst.msk [vmem:[%s190 + $0x118] sm:$0xf] %vm1574, %v1516
        %1646 = vst.msk [vmem:[%s190 + $0x11c] sm:$0xf] %vm1574, %v1517
        %1647 = vst.msk [vmem:[%s190 + $0x120] sm:$0xf] %vm1574, %v1518
        %1648 = vst.msk [vmem:[%s190 + $0x124] sm:$0xf] %vm1574, %v1519
        %1649 = vst.msk [vmem:[%s190 + $0x128] sm:$0xf] %vm1574, %v1520
        %1650 = vst.msk [vmem:[%s190 + $0x12c] sm:$0xf] %vm1574, %v1521
        %1651 = vst.msk [vmem:[%s190 + $0x130] sm:$0xf] %vm1574, %v1522
        %1652 = vst.msk [vmem:[%s190 + $0x134] sm:$0xf] %vm1574, %v1523
        %1653 = vst.msk [vmem:[%s190 + $0x138] sm:$0xf] %vm1574, %v1524
        %1654 = vst.msk [vmem:[%s190 + $0x13c] sm:$0xf] %vm1574, %v1525
        %1655 = vst.msk [vmem:[%s190 + $0x140] sm:$0xf] %vm1574, %v1526
        %1656 = vst.msk [vmem:[%s190 + $0x144] sm:$0xf] %vm1574, %v1527
        %1657 = vst.msk [vmem:[%s190 + $0x148] sm:$0xf] %vm1574, %v1528
        %1658 = vst.msk [vmem:[%s190 + $0x14c] sm:$0xf] %vm1574, %v1529
        %1659 = vst.msk [vmem:[%s190 + $0x150] sm:$0xf] %vm1574, %v1530
        %1660 = vst.msk [vmem:[%s190 + $0x154] sm:$0xf] %vm1574, %v1531
        %1661 = vst.msk [vmem:[%s190 + $0x158] sm:$0xf] %vm1574, %v1532
        %1662 = vst.msk [vmem:[%s190 + $0x15c] sm:$0xf] %vm1574, %v1533
        %1663 = vst.msk [vmem:[%s190 + $0x160] sm:$0xf] %vm1574, %v1534
        %1664 = vst.msk [vmem:[%s190 + $0x164] sm:$0xf] %vm1574, %v1535
        %1665 = vst.msk [vmem:[%s190 + $0x168] sm:$0xf] %vm1574, %v1536
        %1666 = vst.msk [vmem:[%s190 + $0x16c] sm:$0xf] %vm1574, %v1537
        %1667 = vst.msk [vmem:[%s190 + $0x170] sm:$0xf] %vm1574, %v1538
        %1668 = vst.msk [vmem:[%s190 + $0x174] sm:$0xf] %vm1574, %v1539
        %1669 = vst.msk [vmem:[%s190 + $0x178] sm:$0xf] %vm1574, %v1540
        %1670 = vst.msk [vmem:[%s190 + $0x17c] sm:$0xf] %vm1574, %v1541
        %1671 = vst.msk [vmem:[%s190 + $0x180] sm:$0xf] %vm1574, %v1542
        %1672 = vst.msk [vmem:[%s190 + $0x184] sm:$0xf] %vm1574, %v1543
        %1673 = vst.msk [vmem:[%s190 + $0x188] sm:$0xf] %vm1574, %v1544
        %1674 = vst.msk [vmem:[%s190 + $0x18c] sm:$0xf] %vm1574, %v1545
        %1675 = vst.msk [vmem:[%s190 + $0x190] sm:$0xf] %vm1574, %v1546
        %1676 = vst.msk [vmem:[%s190 + $0x194] sm:$0xf] %vm1574, %v1547
        %1677 = vst.msk [vmem:[%s190 + $0x198] sm:$0xf] %vm1574, %v1548
        %1678 = vst.msk [vmem:[%s190 + $0x19c] sm:$0xf] %vm1574, %v1549
        %1679 = vst.msk [vmem:[%s190 + $0x1a0] sm:$0xf] %vm1574, %v1550
        %1680 = vst.msk [vmem:[%s190 + $0x1a4] sm:$0xf] %vm1574, %v1551
        %1681 = vst.msk [vmem:[%s190 + $0x1a8] sm:$0xf] %vm1574, %v1552
        %1682 = vst.msk [vmem:[%s190 + $0x1ac] sm:$0xf] %vm1574, %v1553
        %1683 = vst.msk [vmem:[%s190 + $0x1b0] sm:$0xf] %vm1574, %v1554
        %1684 = vst.msk [vmem:[%s190 + $0x1b4] sm:$0xf] %vm1574, %v1555
        %1685 = vst.msk [vmem:[%s190 + $0x1b8] sm:$0xf] %vm1574, %v1556
        %1686 = vst.msk [vmem:[%s190 + $0x1bc] sm:$0xf] %vm1574, %v1557
        %1687 = vst.msk [vmem:[%s190 + $0x1c0] sm:$0xf] %vm1574, %v1558
        %1688 = vst.msk [vmem:[%s190 + $0x1c4] sm:$0xf] %vm1574, %v1559
        %1689 = vst.msk [vmem:[%s190 + $0x1c8] sm:$0xf] %vm1574, %v1560
        %1690 = vst.msk [vmem:[%s190 + $0x1cc] sm:$0xf] %vm1574, %v1561
        %1691 = vst.msk [vmem:[%s190 + $0x1d0] sm:$0xf] %vm1574, %v1562
        %1692 = vst.msk [vmem:[%s190 + $0x1d4] sm:$0xf] %vm1574, %v1563
        %1693 = vst.msk [vmem:[%s190 + $0x1d8] sm:$0xf] %vm1574, %v1564
        %1694 = vst.msk [vmem:[%s190 + $0x1dc] sm:$0xf] %vm1574, %v1565
        %1695 = vst.msk [vmem:[%s190 + $0x1e0] sm:$0xf] %vm1574, %v1566
        %1696 = vst.msk [vmem:[%s190 + $0x1e4] sm:$0xf] %vm1574, %v1567
        %1697 = vst.msk [vmem:[%s190 + $0x1e8] sm:$0xf] %vm1574, %v1568
        %1698 = vst.msk [vmem:[%s190 + $0x1ec] sm:$0xf] %vm1574, %v1569
        %1699 = vst.msk [vmem:[%s190 + $0x1f0] sm:$0xf] %vm1574, %v1570
        %1700 = vst.msk [vmem:[%s190 + $0x1f4] sm:$0xf] %vm1574, %v1571
        %1701 = vst.msk [vmem:[%s190 + $0x1f8] sm:$0xf] %vm1574, %v1572
        %1702 = vst.msk [vmem:[%s190 + $0x1fc] sm:$0xf] %vm1574, %v1573
        %s1703 = sand.u32 %s96, 1
        %s1704 = scalar_lea.sflag [#allocation4], %s1703
        %s1705 = sand.u32 %s96, 1
        %s1706 = smul.addr %s1705, 512
        %s1707 = scalar_lea.vmem [#allocation5], %s1706
        // Predicated region
        $region37: #{tpu_custom_call.1} parent=31 // pred_check
          %p1708 = pneg %p106
        $region38: #{tpu_custom_call.1} parent=31 // pred_check_branch
          %1710 = sbr.rel (%p1708) target = $region40
        $region39: #{tpu_custom_call.1} parent=31 // pred_region
          %s1711 = smul.u32 128, %s20
          %1713 = vsyncadd %s1704, 0
          %s1714 = smul.addr %s1711, 4
          %s1715 = scalar_lea.hbm %s3, %s1714
          %s1716 = sshll.u32 %s1707, 4
          %s1717 = int_to_ptr.vmem [resolvable:$true] %s1716
          %s1718 = sshll.u32 %s1715, 4
          %s1719 = int_to_ptr.hbm [resolvable:$true] %s1718
          %1724 = dma.vmem_to_hbm [thread:$0]  %s1717, 8192, %s1719, %s1704, 64, 64, 4
        $region40: #{tpu_custom_call.1} parent=31 // pred_fallthru
          _
      $region32: #{tpu_custom_call.1} parent=5 // pred_fallthru
        _
      %p1725 = scmp.le.s32.totalorder 2, %s15
      // Predicated region
      $region41: #{tpu_custom_call.1} parent=5 // pred_check
        %p1726 = pneg %p1725
      $region42: #{tpu_custom_call.1} parent=5 // pred_check_branch
        %1728 = sbr.rel (%p1726) target = $region44
      $region43: #{tpu_custom_call.1} parent=5 // pred_region
        %s1729 = ssub.s32 %s15, 2
        // Predicated region
        $region45: #{tpu_custom_call.1} parent=43 // pred_check
          %p1730 = pneg %p112
        $region46: #{tpu_custom_call.1} parent=43 // pred_check_branch
          %1732 = sbr.rel (%p1730) target = $region48
        $region47: #{tpu_custom_call.1} parent=43 // pred_region
          %s1733 = sand.u32 %s97, 1
          %s1734 = scalar_lea.sflag [#allocation4], %s1733
          %s1735 = sand.u32 %s97, 1
          %s1736 = smul.addr %s1735, 512
          %s1737 = scalar_lea.vmem [#allocation5], %s1736
          %1739 = dma.done %s1734, 8192
        $region48: #{tpu_custom_call.1} parent=43 // pred_fallthru
          _
      $region44: #{tpu_custom_call.1} parent=5 // pred_fallthru
        _
    $region6: #{tpu_custom_call.1} parent=1 // loop_footer
      %s19 = sadd.s32 1, %s15
    $region7: #{tpu_custom_call.1} parent=1 // loop_footer_branch
      %14 = sbr.rel target = $region3
    $region8: #{tpu_custom_call.1} parent=1 // loop_exit
      _
    %1740 = vsyncpa [#allocation3], 1
    %s1741 = scalar_lea.sflag [#allocation3], 1
    %1742 = vsyncpa %s1741, 1
    %1743 = vsyncpa [#allocation4], 1
    %s1744 = scalar_lea.sflag [#allocation4], 1
    %1745 = vsyncpa %s1744, 1

</llo_original>
